<compile_context>
chip_gen: v6e
topology: v6e:2x2x1
jax: 0.10.0
libtpu: 0.0.40
codegen_flags: <defaults>
</compile_context>

<pallas_src>
import math
import numpy as np
import jax
import jax.numpy as jnp
from jax import lax
from jax.experimental import pallas as pl
from jax.experimental.pallas import tpu as pltpu


# ---------------------------------------------------------------------------
# Weight construction (mirrors gaussain_blur.gaussian_kernel, dim=3, channels=1)
# ---------------------------------------------------------------------------
def _gauss_1d(K, std):
    coords = np.arange(K, dtype=np.float64)
    mean = (K - 1) / 2.0
    # NOTE: original PyTorch code uses exp(-((x-mean)/(2*std))**2) — kept as-is.
    return (1.0 / (std * math.sqrt(2.0 * math.pi))
            * np.exp(-((coords - mean) / (2.0 * std)) ** 2))


def gaussian_kernel_3d(size, sigma):
    """Exactly mirrors gaussain_blur.gaussian_kernel (dim=3, channels=1)."""
    K = 2 * size + 1
    k = (_gauss_1d(K, sigma[0])[:, None, None]
         * _gauss_1d(K, sigma[1])[None, :, None]
         * _gauss_1d(K, sigma[2])[None, None, :])
    k = k / k.sum()
    return k.astype(np.float32)


def _banded_conv_matrix(g1d, n):
    """M such that (x @ M)[i] = sum_t x[i+t] * g[t+s]  (zero-padded borders)."""
    K = g1d.shape[0]
    s = (K - 1) // 2
    M = np.zeros((n, n), np.float64)
    for i in range(n):                 # output position
        for t in range(-s, s + 1):
            j = i + t                  # input position
            if 0 <= j < n:
                M[j, i] = g1d[t + s]
    return M


def _build_matrices(size, sigma, D, H, W, Nb):
    K = 2 * size + 1
    gD = _gauss_1d(K, sigma[0]); gD = gD / gD.sum()
    gH = _gauss_1d(K, sigma[1]); gH = gH / gH.sum()
    gW = _gauss_1d(K, sigma[2]); gW = gW / gW.sum()
    m_h = _banded_conv_matrix(gH, H)
    m_w = _banded_conv_matrix(gW, W)
    m_d = _banded_conv_matrix(gD, D)
    # (H,W)-plane conv: rows (one per (n,d)) are flattened h*W+w; y = x @ m_hw.
    m_hw = np.kron(m_h, m_w)                          # (H*W, H*W)
    # Depth conv across the D rows of each sample in the block: y = m_dblk @ x.
    m_dblk = np.kron(np.eye(Nb), m_d.T)               # (Nb*D, Nb*D)
    return (jnp.asarray(m_hw.astype(np.float32)),
            jnp.asarray(m_dblk.astype(np.float32)))


def _choose_block_samples(N, D, HW):
    """Samples per grid step.

    Prefer >= 2 grid steps (so a v7x chip can shard the 'parallel' axis across
    its two TensorCores) while keeping the sublane dim (Nb*D) a multiple of 8
    and the per-step x block within a small VMEM budget. Fall back to any
    layout-legal divisor, then to the full array (always layout-legal).
    """
    budget = 4 << 20                                  # 4 MiB per x block
    for nb in range(N // 2, 0, -1):
        if N % nb == 0 and (nb * D) % 8 == 0 and nb * D * HW * 4 <= budget:
            return nb
    for nb in range(N, 0, -1):
        if N % nb == 0 and (nb * D) % 8 == 0 and nb * D * HW * 4 <= budget:
            return nb
    return N                                          # single full block


# ---------------------------------------------------------------------------
# Pallas kernel
# ---------------------------------------------------------------------------
def _blur_kernel(x_ref, mhw_ref, mdblk_ref, o_ref):
    # x_ref: (Nb*D, H*W) lane-dense rows of Nb samples.
    x = x_ref[...]
    # H/W-plane convolution on the MXU (banded Kronecker matrix; zero padding
    # at the borders is baked into the matrix).
    hw = jnp.dot(x, mhw_ref[...],
                 preferred_element_type=jnp.float32,
                 precision=lax.Precision.HIGHEST)
    # Depth convolution: block-diagonal banded matrix mixes the D rows of each
    # sample (also on the MXU).
    out = jnp.dot(mdblk_ref[...], hw,
                  preferred_element_type=jnp.float32,
                  precision=lax.Precision.HIGHEST)
    o_ref[...] = out


def gaussian_blur(x, size, sigma):
    B, C, D, H, W = x.shape
    assert C == 2, "forward() assumes the second axis has size 2"
    N = B * C
    HW = H * W

    Nb = _choose_block_samples(N, D, HW)
    rows = Nb * D

    m_hw, m_dblk = _build_matrices(size, sigma, D, H, W, Nb)

    # Contiguous reshape (free): (B, 2, D, H, W) -> (N*D, H*W), lane-dense rows.
    x2 = x.reshape(N * D, HW).astype(jnp.float32)

    out2 = pl.pallas_call(
        _blur_kernel,
        out_shape=jax.ShapeDtypeStruct((N * D, HW), jnp.float32),
        grid=(N // Nb,),
        in_specs=[
            pl.BlockSpec((rows, HW), lambda i: (i, 0)),        # sample rows
            pl.BlockSpec((HW, HW), lambda i: (0, 0)),          # plane conv matrix
            pl.BlockSpec((rows, rows), lambda i: (0, 0)),      # depth conv matrix
        ],
        out_specs=pl.BlockSpec((rows, HW), lambda i: (i, 0)),
        compiler_params=pltpu.CompilerParams(
            dimension_semantics=("parallel",)),                # shard over 2 TCs on v7x
    )(x2, m_hw, m_dblk)

    return out2.reshape(B, C, D, H, W)


# ---------------------------------------------------------------------------
# Pure-JAX reference: direct K^3 tap sum (same semantics as F.conv3d path).
# ---------------------------------------------------------------------------
def _reference_blur(x, size, sigma):
    B, C, D, H, W = x.shape
    K = 2 * size + 1
    p = size
    k3 = jnp.asarray(gaussian_kernel_3d(size, sigma))
    xn = x.reshape(B * C, D, H, W)
    xp = jnp.pad(xn, ((0, 0), (p, p), (p, p), (p, p)))
    acc = jnp.zeros((B * C, D, H, W), jnp.float32)
    for kd in range(K):
        for kh in range(K):
            for kw in range(K):
                acc = acc + k3[kd, kh, kw] * xp[:, kd:kd + D, kh:kh + H, kw:kw + W]
    return acc.reshape(B, C, D, H, W)


if __name__ == "__main__":
    # Module params (static): size=1 -> 3x3x3 kernel, per-axis sigma, dim=3,
    # channels=1 (required for the original conv3d to type-check).
    size = 1
    sigma = (1.0, 1.5, 2.0)

    key = jax.random.PRNGKey(0)
    x = jax.random.normal(key, (2, 2, 8, 16, 16), dtype=jnp.float32)

    y = gaussian_blur(x, size, sigma)
    y = jax.block_until_ready(y)

    y_ref = _reference_blur(x, size, sigma)
    assert y.shape == x.shape and y.dtype == jnp.float32
    # Tolerance loosened slightly vs. the K^3 reference: the separable/MXU
    # formulation changes the floating-point summation order.
    np.testing.assert_allclose(np.asarray(y), np.asarray(y_ref), rtol=1e-4, atol=1e-4)

    print("KERNEL_OK")
</pallas_src>

<mosaic_0001>
module attributes {stable_mosaic.version = 11 : i64} {
  func.func @_blur_kernel(%arg0: i32, %arg1: memref<16x256xf32, #tpu.memory_space<vmem>>, %arg2: memref<256x256xf32, #tpu.memory_space<vmem>>, %arg3: memref<16x16xf32, #tpu.memory_space<vmem>>, %arg4: memref<16x256xf32, #tpu.memory_space<vmem>>) attributes {dimension_semantics = [#tpu.dimension_semantics<parallel>], iteration_bounds = array<i64: 2>, scalar_prefetch = 0 : i64, scratch_operands = 0 : i64, tpu.core_type = #tpu.core_type<tc>, window_params = [{transform_indices = @transform_0, window_bounds = array<i64: 16, 256>}, {pipeline_mode = #tpu.pipeline_mode<synchronous>, transform_indices = @transform_1, window_bounds = array<i64: 256, 256>}, {pipeline_mode = #tpu.pipeline_mode<synchronous>, transform_indices = @transform_2, window_bounds = array<i64: 16, 16>}, {transform_indices = @transform_3, window_bounds = array<i64: 16, 256>}]} {
    %c0 = arith.constant 0 : index
    %c0_0 = arith.constant 0 : index
    %0 = vector.load %arg1[%c0, %c0_0] : memref<16x256xf32, #tpu.memory_space<vmem>>, vector<16x256xf32>
    %c0_1 = arith.constant 0 : index
    %c0_2 = arith.constant 0 : index
    %1 = vector.load %arg2[%c0_1, %c0_2] : memref<256x256xf32, #tpu.memory_space<vmem>>, vector<256x256xf32>
    %cst = arith.constant dense<0.000000e+00> : vector<16x256xf32>
    %2 = tpu.matmul %0, %1, %cst {dimension_numbers = #tpu.dot_dimension_numbers<[1], [0], [0], [1], [0, 0, 1, 1], [], []>, precision = #tpu.contract_precision<fp32>} : vector<16x256xf32>, vector<256x256xf32>, vector<16x256xf32> -> vector<16x256xf32>
    %c0_3 = arith.constant 0 : index
    %c0_4 = arith.constant 0 : index
    %3 = vector.load %arg3[%c0_3, %c0_4] : memref<16x16xf32, #tpu.memory_space<vmem>>, vector<16x16xf32>
    %cst_5 = arith.constant dense<0.000000e+00> : vector<16x256xf32>
    %4 = tpu.matmul %3, %2, %cst_5 {dimension_numbers = #tpu.dot_dimension_numbers<[1], [0], [0], [1], [0, 0, 1, 1], [], []>, precision = #tpu.contract_precision<fp32>} : vector<16x16xf32>, vector<16x256xf32>, vector<16x256xf32> -> vector<16x256xf32>
    %c0_6 = arith.constant 0 : index
    %c0_7 = arith.constant 0 : index
    %5 = vector.load %arg4[%c0_6, %c0_7] : memref<16x256xf32, #tpu.memory_space<vmem>>, vector<16x256xf32>
    tpu.vector_store %arg4[%c0_6, %c0_7], %4 {strides = array<i32>} : memref<16x256xf32, #tpu.memory_space<vmem>>, vector<16x256xf32>,
    return
  }
  func.func @transform_0(%arg0: i32) -> (i32, i32) {
    %c0_i32 = arith.constant 0 : i32
    %c0_i32_0 = arith.constant 0 : i32
    return %arg0, %c0_i32 : i32, i32
  }
  func.func @transform_1(%arg0: i32) -> (i32, i32) {
    %c0_i32 = arith.constant 0 : i32
    %c0_i32_0 = arith.constant 0 : i32
    %c0_i32_1 = arith.constant 0 : i32
    return %c0_i32, %c0_i32_0 : i32, i32
  }
  func.func @transform_2(%arg0: i32) -> (i32, i32) {
    %c0_i32 = arith.constant 0 : i32
    %c0_i32_0 = arith.constant 0 : i32
    %c0_i32_1 = arith.constant 0 : i32
    return %c0_i32, %c0_i32_0 : i32, i32
  }
  func.func @transform_3(%arg0: i32) -> (i32, i32) {
    %c0_i32 = arith.constant 0 : i32
    %c0_i32_0 = arith.constant 0 : i32
    return %arg0, %c0_i32 : i32, i32
  }
}

</mosaic_0001>

<llo_original>
// kernel: tpu_custom_call.1
$region0: #{tpu_custom_call.1}
  #allocation0 [shape = 'u32[]', space=smem, size = 0x4, offset = 0x4, fixed_abs, tag = 'smem constant byte address 0x4 - core index']
  #allocation1 [shape = 'u32[144,128]{1,0:T(1,128)}', space=vmem, size = 0x12000, scoped, tag = 'internal scratch']
  %s0 = inlined_call_operand.hbm [shape: f32[32,256], index: 0, kind: input, shape index: {}]
  %s1 = inlined_call_operand.hbm [shape: f32[256,256], index: 1, kind: input, shape index: {}]
  %s2 = inlined_call_operand.hbm [shape: f32[16,16], index: 2, kind: input, shape index: {}]
  %s3 = inlined_call_operand.hbm [shape: f32[32,256], index: 3, kind: output, shape index: {}]
  %s4 = sld [smem:[#allocation0]]
  $region57: #{tpu_custom_call.1} parent=0
    _
  %s6 = ssub.s32 1, %s4
  %s7 = scalar_select 0, %s6, %s4
  $region1: #{tpu_custom_call.1} parent=0
    #allocation2 [shape = 'u8[32768]{0}', space=vmem, size = 0x8000, scoped, tag = 'input window, operand 0']
    #allocation3 [shape = 's32[2]{0}', space=sflag, size = 0x8, scoped, tag = 'scoped memory for tpu_custom_call.1']
    #allocation4 [shape = 's32[2]{0}', space=sflag, size = 0x8, scoped, tag = 'scoped memory for tpu_custom_call.1']
    #allocation5 [shape = 'u8[262144]{0}', space=vmem, size = 0x40000, scoped, tag = 'input window, operand 1, single buffered']
    #allocation6 [shape = 's32[1]{0}', space=sflag, size = 0x4, scoped, tag = 'scoped memory for tpu_custom_call.1']
    #allocation7 [shape = 'u8[8192]{0}', space=vmem, size = 0x2000, scoped, tag = 'input window, operand 2, single buffered']
    #allocation8 [shape = 'u8[32768]{0}', space=vmem, size = 0x8000, scoped, tag = 'output window, operand 0']
    %8 = vsyncpa [#allocation3], 0
    %s9 = scalar_lea.sflag [#allocation3], 1
    %10 = vsyncpa %s9, 0
    %11 = vsyncpa [#allocation6], 0
    %12 = vsyncpa [#allocation4], 0
    %s13 = scalar_lea.sflag [#allocation4], 1
    %14 = vsyncpa %s13, 0
    loop: start=0, step=1, limit=4
    $region2: #{tpu_custom_call.1} parent=1 // loop_pre_header
      _
    $region3: #{tpu_custom_call.1} parent=1 // loop_header
      %s16 = sphi 0, %s20
      %p17 = scmp.ge.s32.totalorder %s16, 4
      %s26 = sphi 0, %s28
      %s29 = sphi 0, %s26
      %s30 = sphi 0, %s29
      %s46 = sphi 0, %s30
      %s50 = sphi 0, %s50
      %s52 = sphi 0, %s50
      %s53 = sphi 0, %s52
      %s67 = sphi 0, %s53
      %s71 = sphi 0, %s71
      %s73 = sphi 0, %s71
      %s74 = sphi 0, %s73
      %s88 = sphi 0, %s74
      %s94 = sphi 0, %s96
      %s97 = sphi 0, %s94
      %s98 = sphi 0, %s97
      %s114 = sphi 0, %s98
    $region4: #{tpu_custom_call.1} parent=1 // loop_header_branch
      %19 = sbr.rel (%p17) target = $region8
    $region5: #{tpu_custom_call.1} parent=1 // loop_body
      %s21 = ssub.s32 %s16, 1
      %s22 = ssub.s32 %s16, 2
      %s23 = sadd.s32 %s16, 1
      %s24 = ssub.s32 %s16, %s23
      %p25 = scmp.eq.s32.totalorder %s24, 0
      %s27 = sadd.s32 %s26, 1
      %s28 = scalar_select %p25, %s26, %s27
      %p31 = pneg %p25
      %p32 = scmp.eq.s32.totalorder %s16, 1
      %p33 = por %p31, %p32
      %p34 = scmp.ne.s32.totalorder %s26, %s29
      %p35 = scmp.eq.s32.totalorder %s16, 0
      %p36 = por %p34, %p35
      %p37 = scmp.ne.s32.totalorder %s26, %s29
      %p38 = scmp.eq.s32.totalorder %s21, 1
      %p39 = por %p37, %p38
      %p40 = scmp.ne.s32.totalorder %s29, %s30
      %p41 = scmp.eq.s32.totalorder %s21, 0
      %p42 = por %p40, %p41
      %p43 = scmp.ne.s32.totalorder %s29, %s30
      %p44 = scmp.eq.s32.totalorder %s22, 1
      %p45 = por %p43, %p44
      %p47 = scmp.ne.s32.totalorder %s30, %s46
      %p48 = scmp.eq.s32.totalorder %s22, 0
      %p49 = por %p47, %p48
      %s51 = sadd.s32 %s50, 1
      %p54 = scmp.eq.s32.totalorder %s16, 1
      %p55 = scmp.ne.s32.totalorder %s50, %s52
      %p56 = scmp.eq.s32.totalorder %s16, 0
      %p57 = por %p55, %p56
      %p58 = scmp.ne.s32.totalorder %s50, %s52
      %p59 = scmp.eq.s32.totalorder %s21, 1
      %p60 = por %p58, %p59
      %p61 = scmp.ne.s32.totalorder %s52, %s53
      %p62 = scmp.eq.s32.totalorder %s21, 0
      %p63 = por %p61, %p62
      %p64 = scmp.ne.s32.totalorder %s52, %s53
      %p65 = scmp.eq.s32.totalorder %s22, 1
      %p66 = por %p64, %p65
      %p68 = scmp.ne.s32.totalorder %s53, %s67
      %p69 = scmp.eq.s32.totalorder %s22, 0
      %p70 = por %p68, %p69
      %s72 = sadd.s32 %s71, 1
      %p75 = scmp.eq.s32.totalorder %s16, 1
      %p76 = scmp.ne.s32.totalorder %s71, %s73
      %p77 = scmp.eq.s32.totalorder %s16, 0
      %p78 = por %p76, %p77
      %p79 = scmp.ne.s32.totalorder %s71, %s73
      %p80 = scmp.eq.s32.totalorder %s21, 1
      %p81 = por %p79, %p80
      %p82 = scmp.ne.s32.totalorder %s73, %s74
      %p83 = scmp.eq.s32.totalorder %s21, 0
      %p84 = por %p82, %p83
      %p85 = scmp.ne.s32.totalorder %s73, %s74
      %p86 = scmp.eq.s32.totalorder %s22, 1
      %p87 = por %p85, %p86
      %p89 = scmp.ne.s32.totalorder %s74, %s88
      %p90 = scmp.eq.s32.totalorder %s22, 0
      %p91 = por %p89, %p90
      %s92 = ssub.s32 %s16, %s23
      %p93 = scmp.eq.s32.totalorder %s92, 0
      %s95 = sadd.s32 %s94, 1
      %s96 = scalar_select %p93, %s94, %s95
      %p99 = pneg %p93
      %p100 = scmp.eq.s32.totalorder %s16, 1
      %p101 = por %p99, %p100
      %p102 = scmp.ne.s32.totalorder %s94, %s97
      %p103 = scmp.eq.s32.totalorder %s16, 0
      %p104 = por %p102, %p103
      %p105 = scmp.ne.s32.totalorder %s94, %s97
      %p106 = scmp.eq.s32.totalorder %s21, 1
      %p107 = por %p105, %p106
      %p108 = scmp.ne.s32.totalorder %s97, %s98
      %p109 = scmp.eq.s32.totalorder %s21, 0
      %p110 = por %p108, %p109
      %p111 = scmp.ne.s32.totalorder %s97, %s98
      %p112 = scmp.eq.s32.totalorder %s22, 1
      %p113 = por %p111, %p112
      %p115 = scmp.ne.s32.totalorder %s98, %s114
      %p116 = scmp.eq.s32.totalorder %s22, 0
      %p117 = por %p115, %p116
      %p118 = scmp.le.s32.totalorder 1, %s16
      %p119 = scmp.lt.s32.totalorder %s16, 3
      %p120 = pnand %p118, %p119
      %p121 = pneg %p120
      // Predicated region
      $region9: #{tpu_custom_call.1} parent=5 // pred_check
        _
      $region10: #{tpu_custom_call.1} parent=5 // pred_check_branch
        %123 = sbr.rel (%p120) target = $region12
      $region11: #{tpu_custom_call.1} parent=5 // pred_region
        %s124 = ssub.s32 %s16, 1
        // Predicated region
        $region13: #{tpu_custom_call.1} parent=11 // pred_check
          %p125 = pneg %p63
        $region14: #{tpu_custom_call.1} parent=11 // pred_check_branch
          %127 = sbr.rel (%p125) target = $region16
        $region15: #{tpu_custom_call.1} parent=11 // pred_region
          %s129 = ssub.s32 8192, 8192
          %130 = vsyncadd [#allocation6], %s129
          %s131 = sshll.u32 [#allocation5], 4
          %s132 = int_to_ptr.vmem [resolvable:$true] %s131
          %137 = dma.hbm_to_vmem [thread:$0]  %s1, 8192, %s132, [#allocation6], 256, 256, 16
        $region16: #{tpu_custom_call.1} parent=11 // pred_fallthru
          _
        // Predicated region
        $region17: #{tpu_custom_call.1} parent=11 // pred_check
          %p138 = pneg %p84
        $region18: #{tpu_custom_call.1} parent=11 // pred_check_branch
          %140 = sbr.rel (%p138) target = $region20
        $region19: #{tpu_custom_call.1} parent=11 // pred_region
          %s142 = ssub.s32 256, 256
          %143 = vsyncadd [#allocation6], %s142
          %s144 = sshll.u32 [#allocation7], 4
          %s145 = int_to_ptr.vmem [resolvable:$true] %s144
          %150 = dma.hbm_to_vmem [thread:$0]  %s2, 256, %s145, [#allocation6], 128, 128, 8
        $region20: #{tpu_custom_call.1} parent=11 // pred_fallthru
          _
      $region12: #{tpu_custom_call.1} parent=5 // pred_fallthru
        _
      %p151 = scmp.lt.s32.totalorder %s16, 2
      // Predicated region
      $region21: #{tpu_custom_call.1} parent=5 // pred_check
        %p152 = pneg %p151
      $region22: #{tpu_custom_call.1} parent=5 // pred_check_branch
        %154 = sbr.rel (%p152) target = $region24
      $region23: #{tpu_custom_call.1} parent=5 // pred_region
        // Predicated region
        $region25: #{tpu_custom_call.1} parent=23 // pred_check
          %p155 = pneg %p36
        $region26: #{tpu_custom_call.1} parent=23 // pred_check_branch
          %157 = sbr.rel (%p155) target = $region28
        $region27: #{tpu_custom_call.1} parent=23 // pred_region
          %s158 = sand.u32 %s26, 1
          %s159 = scalar_lea.sflag [#allocation3], %s158
          %s160 = sand.u32 %s26, 1
          %s161 = smul.addr %s160, 32
          %s162 = scalar_lea.vmem [#allocation2], %s161
          %s163 = smul.u32 2, %s16
          %s165 = ssub.s32 512, 512
          %166 = vsyncadd %s159, %s165
          %s167 = smul.addr %s163, 2
          %s168 = smul.addr %s167, 128
          %s169 = scalar_lea.hbm %s0, %s168
          %s170 = sshll.u32 %s162, 4
          %s171 = int_to_ptr.vmem [resolvable:$true] %s170
          %176 = dma.hbm_to_vmem [thread:$0]  %s169, 512, %s171, %s159, 256, 256, 16
        $region28: #{tpu_custom_call.1} parent=23 // pred_fallthru
          _
      $region24: #{tpu_custom_call.1} parent=5 // pred_fallthru
        _
      %p177 = scmp.le.s32.totalorder 1, %s16
      %p178 = scmp.lt.s32.totalorder %s16, 3
      %p179 = pnand %p177, %p178
      %p180 = pneg %p179
      // Predicated region
      $region29: #{tpu_custom_call.1} parent=5 // pred_check
        _
      $region30: #{tpu_custom_call.1} parent=5 // pred_check_branch
        %182 = sbr.rel (%p179) target = $region32
      $region31: #{tpu_custom_call.1} parent=5 // pred_region
        %s183 = ssub.s32 %s16, 1
        %s184 = sand.u32 %s29, 1
        %s185 = scalar_lea.sflag [#allocation3], %s184
        %s186 = sand.u32 %s29, 1
        %s187 = smul.addr %s186, 32
        %s188 = scalar_lea.vmem [#allocation2], %s187
        // Predicated region
        $region33: #{tpu_custom_call.1} parent=31 // pred_check
          %p189 = pneg %p42
        $region34: #{tpu_custom_call.1} parent=31 // pred_check_branch
          %191 = sbr.rel (%p189) target = $region36
        $region35: #{tpu_custom_call.1} parent=31 // pred_region
          %192 = dma.done %s185, 512
        $region36: #{tpu_custom_call.1} parent=31 // pred_fallthru
          _
        // Predicated region
        $region37: #{tpu_custom_call.1} parent=31 // pred_check
          %p193 = pneg %p63
        $region38: #{tpu_custom_call.1} parent=31 // pred_check_branch
          %195 = sbr.rel (%p193) target = $region40
        $region39: #{tpu_custom_call.1} parent=31 // pred_region
          %196 = dma.done [#allocation6], 8192
        $region40: #{tpu_custom_call.1} parent=31 // pred_fallthru
          _
        // Predicated region
        $region41: #{tpu_custom_call.1} parent=31 // pred_check
          %p197 = pneg %p84
        $region42: #{tpu_custom_call.1} parent=31 // pred_check_branch
          %199 = sbr.rel (%p197) target = $region44
        $region43: #{tpu_custom_call.1} parent=31 // pred_region
          %200 = dma.done [#allocation6], 256
        $region44: #{tpu_custom_call.1} parent=31 // pred_fallthru
          _
        %s201 = sand.u32 %s29, 1
        %s202 = scalar_lea.sflag [#allocation3], %s201
        %s203 = sand.u32 %s29, 1
        %s204 = smul.addr %s203, 32
        %s205 = scalar_lea.vmem [#allocation2], %s204
        %p206 = pneg %p42
        %p207 = pneg %p39
        %p208 = pneg %p63
        %p209 = pneg %p60
        %p210 = pneg %p84
        %p211 = pneg %p81
        %p212 = pneg %p110
        %p213 = pneg %p107
        %s214 = sand.u32 %s97, 1
        %s215 = scalar_lea.sflag [#allocation4], %s214
        %s216 = sand.u32 %s97, 1
        %s217 = smul.addr %s216, 32
        %s218 = scalar_lea.vmem [#allocation8], %s217
        %s219 = smul.u32 2, %s21
        %s220 = smul.u32 2, %s21
        %v221 = vld [vmem:[%s188] sm:$0xff]
        %v222 = vld [vmem:[%s188 + $0x8] sm:$0xff]
        %v223 = vld [vmem:[%s188 + $0x10] sm:$0xff]
        %v224 = vld [vmem:[%s188 + $0x18] sm:$0xff]
        %v225 = vld [vmem:[#allocation5] sm:$0xff]
        %v226 = vld [vmem:[#allocation5 + $0x8] sm:$0xff]
        %v227 = vld [vmem:[#allocation5 + $0x10] sm:$0xff]
        %v228 = vld [vmem:[#allocation5 + $0x18] sm:$0xff]
        %v229 = vld [vmem:[#allocation5 + $0x20] sm:$0xff]
        %v230 = vld [vmem:[#allocation5 + $0x28] sm:$0xff]
        %v231 = vld [vmem:[#allocation5 + $0x30] sm:$0xff]
        %v232 = vld [vmem:[#allocation5 + $0x38] sm:$0xff]
        %v233 = vld [vmem:[#allocation5 + $0x40] sm:$0xff]
        %v234 = vld [vmem:[#allocation5 + $0x48] sm:$0xff]
        %v235 = vld [vmem:[#allocation5 + $0x50] sm:$0xff]
        %v236 = vld [vmem:[#allocation5 + $0x58] sm:$0xff]
        %v237 = vld [vmem:[#allocation5 + $0x60] sm:$0xff]
        %v238 = vld [vmem:[#allocation5 + $0x68] sm:$0xff]
        %v239 = vld [vmem:[#allocation5 + $0x70] sm:$0xff]
        %v240 = vld [vmem:[#allocation5 + $0x78] sm:$0xff]
        %v241 = vld [vmem:[#allocation5 + $0x80] sm:$0xff]
        %v242 = vld [vmem:[#allocation5 + $0x88] sm:$0xff]
        %v243 = vld [vmem:[#allocation5 + $0x90] sm:$0xff]
        %v244 = vld [vmem:[#allocation5 + $0x98] sm:$0xff]
        %v245 = vld [vmem:[#allocation5 + $0xa0] sm:$0xff]
        %v246 = vld [vmem:[#allocation5 + $0xa8] sm:$0xff]
        %v247 = vld [vmem:[#allocation5 + $0xb0] sm:$0xff]
        %v248 = vld [vmem:[#allocation5 + $0xb8] sm:$0xff]
        %v249 = vld [vmem:[#allocation5 + $0xc0] sm:$0xff]
        %v250 = vld [vmem:[#allocation5 + $0xc8] sm:$0xff]
        %v251 = vld [vmem:[#allocation5 + $0xd0] sm:$0xff]
        %v252 = vld [vmem:[#allocation5 + $0xd8] sm:$0xff]
        %v253 = vld [vmem:[#allocation5 + $0xe0] sm:$0xff]
        %v254 = vld [vmem:[#allocation5 + $0xe8] sm:$0xff]
        %v255 = vld [vmem:[#allocation5 + $0xf0] sm:$0xff]
        %v256 = vld [vmem:[#allocation5 + $0xf8] sm:$0xff]
        %v257 = vld [vmem:[#allocation5 + $0x100] sm:$0xff]
        %v258 = vld [vmem:[#allocation5 + $0x108] sm:$0xff]
        %v259 = vld [vmem:[#allocation5 + $0x110] sm:$0xff]
        %v260 = vld [vmem:[#allocation5 + $0x118] sm:$0xff]
        %v261 = vld [vmem:[#allocation5 + $0x120] sm:$0xff]
        %v262 = vld [vmem:[#allocation5 + $0x128] sm:$0xff]
        %v263 = vld [vmem:[#allocation5 + $0x130] sm:$0xff]
        %v264 = vld [vmem:[#allocation5 + $0x138] sm:$0xff]
        %v265 = vld [vmem:[#allocation5 + $0x140] sm:$0xff]
        %v266 = vld [vmem:[#allocation5 + $0x148] sm:$0xff]
        %v267 = vld [vmem:[#allocation5 + $0x150] sm:$0xff]
        %v268 = vld [vmem:[#allocation5 + $0x158] sm:$0xff]
        %v269 = vld [vmem:[#allocation5 + $0x160] sm:$0xff]
        %v270 = vld [vmem:[#allocation5 + $0x168] sm:$0xff]
        %v271 = vld [vmem:[#allocation5 + $0x170] sm:$0xff]
        %v272 = vld [vmem:[#allocation5 + $0x178] sm:$0xff]
        %v273 = vld [vmem:[#allocation5 + $0x180] sm:$0xff]
        %v274 = vld [vmem:[#allocation5 + $0x188] sm:$0xff]
        %v275 = vld [vmem:[#allocation5 + $0x190] sm:$0xff]
        %v276 = vld [vmem:[#allocation5 + $0x198] sm:$0xff]
        %v277 = vld [vmem:[#allocation5 + $0x1a0] sm:$0xff]
        %v278 = vld [vmem:[#allocation5 + $0x1a8] sm:$0xff]
        %v279 = vld [vmem:[#allocation5 + $0x1b0] sm:$0xff]
        %v280 = vld [vmem:[#allocation5 + $0x1b8] sm:$0xff]
        %v281 = vld [vmem:[#allocation5 + $0x1c0] sm:$0xff]
        %v282 = vld [vmem:[#allocation5 + $0x1c8] sm:$0xff]
        %v283 = vld [vmem:[#allocation5 + $0x1d0] sm:$0xff]
        %v284 = vld [vmem:[#allocation5 + $0x1d8] sm:$0xff]
        %v285 = vld [vmem:[#allocation5 + $0x1e0] sm:$0xff]
        %v286 = vld [vmem:[#allocation5 + $0x1e8] sm:$0xff]
        %v287 = vld [vmem:[#allocation5 + $0x1f0] sm:$0xff]
        %v288 = vld [vmem:[#allocation5 + $0x1f8] sm:$0xff]
        %v289 = vand.u32 %v256, 4294901760
        %290 = vmatprep.subr.mxu0 %v289
        %v291 = vand.u32 %v255, 4294901760
        %292 = vmatpush1.msra.mxu0 %v291
        %v293 = vand.u32 %v254, 4294901760
        %294 = vmatprep.subr.mxu0 %v293
        %v295 = vand.u32 %v253, 4294901760
        %296 = vmatpush1.msra.mxu0 %v295
        %v297 = vand.u32 %v252, 4294901760
        %298 = vmatprep.subr.mxu0 %v297
        %v299 = vand.u32 %v251, 4294901760
        %300 = vmatpush1.msra.mxu0 %v299
        %v301 = vand.u32 %v250, 4294901760
        %302 = vmatprep.subr.mxu0 %v301
        %v303 = vand.u32 %v249, 4294901760
        %304 = vmatpush1.msra.mxu0 %v303
        %v305 = vand.u32 %v248, 4294901760
        %306 = vmatprep.subr.mxu0 %v305
        %v307 = vand.u32 %v247, 4294901760
        %308 = vmatpush1.msra.mxu0 %v307
        %v309 = vand.u32 %v246, 4294901760
        %310 = vmatprep.subr.mxu0 %v309
        %v311 = vand.u32 %v245, 4294901760
        %312 = vmatpush1.msra.mxu0 %v311
        %v313 = vand.u32 %v244, 4294901760
        %314 = vmatprep.subr.mxu0 %v313
        %v315 = vand.u32 %v243, 4294901760
        %316 = vmatpush1.msra.mxu0 %v315
        %v317 = vand.u32 %v242, 4294901760
        %318 = vmatprep.subr.mxu0 %v317
        %v319 = vand.u32 %v241, 4294901760
        %320 = vmatpush1.msra.mxu0 %v319
        %v321 = vand.u32 %v240, 4294901760
        %322 = vmatprep.subr.mxu0 %v321
        %v323 = vand.u32 %v239, 4294901760
        %324 = vmatpush1.msra.mxu0 %v323
        %v325 = vand.u32 %v238, 4294901760
        %326 = vmatprep.subr.mxu0 %v325
        %v327 = vand.u32 %v237, 4294901760
        %328 = vmatpush1.msra.mxu0 %v327
        %v329 = vand.u32 %v236, 4294901760
        %330 = vmatprep.subr.mxu0 %v329
        %v331 = vand.u32 %v235, 4294901760
        %332 = vmatpush1.msra.mxu0 %v331
        %v333 = vand.u32 %v234, 4294901760
        %334 = vmatprep.subr.mxu0 %v333
        %v335 = vand.u32 %v233, 4294901760
        %336 = vmatpush1.msra.mxu0 %v335
        %v337 = vand.u32 %v232, 4294901760
        %338 = vmatprep.subr.mxu0 %v337
        %v339 = vand.u32 %v231, 4294901760
        %340 = vmatpush1.msra.mxu0 %v339
        %v341 = vand.u32 %v230, 4294901760
        %342 = vmatprep.subr.mxu0 %v341
        %v343 = vand.u32 %v229, 4294901760
        %344 = vmatpush1.msra.mxu0 %v343
        %v345 = vand.u32 %v228, 4294901760
        %346 = vmatprep.subr.mxu0 %v345
        %v347 = vand.u32 %v227, 4294901760
        %348 = vmatpush1.msra.mxu0 %v347
        %v349 = vand.u32 %v226, 4294901760
        %350 = vmatprep.subr.mxu0 %v349
        %v351 = vand.u32 %v225, 4294901760
        %352 = vmatpush1.msra.mxu0 %v351
        %v353 = vand.u32 %v288, 4294901760
        %354 = vmatprep.subr.mxu0 %v353
        %v355 = vand.u32 %v287, 4294901760
        %356 = vmatpush2.msra.mxu0 %v355
        %v357 = vand.u32 %v286, 4294901760
        %358 = vmatprep.subr.mxu0 %v357
        %v359 = vand.u32 %v285, 4294901760
        %360 = vmatpush2.msra.mxu0 %v359
        %v361 = vand.u32 %v284, 4294901760
        %362 = vmatprep.subr.mxu0 %v361
        %v363 = vand.u32 %v283, 4294901760
        %364 = vmatpush2.msra.mxu0 %v363
        %v365 = vand.u32 %v282, 4294901760
        %366 = vmatprep.subr.mxu0 %v365
        %v367 = vand.u32 %v281, 4294901760
        %368 = vmatpush2.msra.mxu0 %v367
        %v369 = vand.u32 %v280, 4294901760
        %370 = vmatprep.subr.mxu0 %v369
        %v371 = vand.u32 %v279, 4294901760
        %372 = vmatpush2.msra.mxu0 %v371
        %v373 = vand.u32 %v278, 4294901760
        %374 = vmatprep.subr.mxu0 %v373
        %v375 = vand.u32 %v277, 4294901760
        %376 = vmatpush2.msra.mxu0 %v375
        %v377 = vand.u32 %v276, 4294901760
        %378 = vmatprep.subr.mxu0 %v377
        %v379 = vand.u32 %v275, 4294901760
        %380 = vmatpush2.msra.mxu0 %v379
        %v381 = vand.u32 %v274, 4294901760
        %382 = vmatprep.subr.mxu0 %v381
        %v383 = vand.u32 %v273, 4294901760
        %384 = vmatpush2.msra.mxu0 %v383
        %v385 = vand.u32 %v272, 4294901760
        %386 = vmatprep.subr.mxu0 %v385
        %v387 = vand.u32 %v271, 4294901760
        %388 = vmatpush2.msra.mxu0 %v387
        %v389 = vand.u32 %v270, 4294901760
        %390 = vmatprep.subr.mxu0 %v389
        %v391 = vand.u32 %v269, 4294901760
        %392 = vmatpush2.msra.mxu0 %v391
        %v393 = vand.u32 %v268, 4294901760
        %394 = vmatprep.subr.mxu0 %v393
        %v395 = vand.u32 %v267, 4294901760
        %396 = vmatpush2.msra.mxu0 %v395
        %v397 = vand.u32 %v266, 4294901760
        %398 = vmatprep.subr.mxu0 %v397
        %v399 = vand.u32 %v265, 4294901760
        %400 = vmatpush2.msra.mxu0 %v399
        %v401 = vand.u32 %v264, 4294901760
        %402 = vmatprep.subr.mxu0 %v401
        %v403 = vand.u32 %v263, 4294901760
        %404 = vmatpush2.msra.mxu0 %v403
        %v405 = vand.u32 %v262, 4294901760
        %406 = vmatprep.subr.mxu0 %v405
        %v407 = vand.u32 %v261, 4294901760
        %408 = vmatpush2.msra.mxu0 %v407
        %v409 = vand.u32 %v260, 4294901760
        %410 = vmatprep.subr.mxu0 %v409
        %v411 = vand.u32 %v259, 4294901760
        %412 = vmatpush2.msra.mxu0 %v411
        %v413 = vand.u32 %v258, 4294901760
        %414 = vmatprep.subr.mxu0 %v413
        %v415 = vand.u32 %v257, 4294901760
        %416 = vmatpush2.msra.mxu0 %v415
        %v417 = vand.u32 %v222, 4294901760
        %v418 = vsub.f32 %v222, %v417
        %v419 = vand.u32 %v418, 4294901760
        %v420 = vsub.f32 %v418, %v419
        %v421 = vand.u32 %v420, 4294901760
        %422 = vmatprep.mubr.f32.mxu0 %v421
        %v423 = vand.u32 %v221, 4294901760
        %v424 = vsub.f32 %v221, %v423
        %v425 = vand.u32 %v424, 4294901760
        %v426 = vsub.f32 %v424, %v425
        %v427 = vand.u32 %v426, 4294901760
        %428 = vmatmul.mubr.f32.gmra.mxu0 %v427
        %v429 = vpop.f32.mrf.mxu0
        %v430 = vadd.f32 0.0, %v429
        %v431 = vpop.f32.mrf.mxu0
        %v432 = vadd.f32 0.0, %v431
        %v433 = vand.u32 %v224, 4294901760
        %v434 = vsub.f32 %v224, %v433
        %v435 = vand.u32 %v434, 4294901760
        %v436 = vsub.f32 %v434, %v435
        %v437 = vand.u32 %v436, 4294901760
        %438 = vmatprep.mubr.f32.mxu0 %v437
        %v439 = vand.u32 %v223, 4294901760
        %v440 = vsub.f32 %v223, %v439
        %v441 = vand.u32 %v440, 4294901760
        %v442 = vsub.f32 %v440, %v441
        %v443 = vand.u32 %v442, 4294901760
        %444 = vmatmul.mubr.f32.gmra.mxu0 %v443
        %v445 = vpop.f32.mrf.mxu0
        %v446 = vadd.f32 0.0, %v445
        %v447 = vpop.f32.mrf.mxu0
        %v448 = vadd.f32 0.0, %v447
        %449 = vdwg.mxu0
        %v450 = vand.u32 %v256, 4294901760
        %v451 = vsub.f32 %v256, %v450
        %v452 = vand.u32 %v451, 4294901760
        %v453 = vsub.f32 %v451, %v452
        %v454 = vand.u32 %v453, 4294901760
        %455 = vmatprep.subr.mxu0 %v454
        %v456 = vand.u32 %v255, 4294901760
        %v457 = vsub.f32 %v255, %v456
        %v458 = vand.u32 %v457, 4294901760
        %v459 = vsub.f32 %v457, %v458
        %v460 = vand.u32 %v459, 4294901760
        %461 = vmatpush1.msra.mxu0 %v460
        %v462 = vand.u32 %v254, 4294901760
        %v463 = vsub.f32 %v254, %v462
        %v464 = vand.u32 %v463, 4294901760
        %v465 = vsub.f32 %v463, %v464
        %v466 = vand.u32 %v465, 4294901760
        %467 = vmatprep.subr.mxu0 %v466
        %v468 = vand.u32 %v253, 4294901760
        %v469 = vsub.f32 %v253, %v468
        %v470 = vand.u32 %v469, 4294901760
        %v471 = vsub.f32 %v469, %v470
        %v472 = vand.u32 %v471, 4294901760
        %473 = vmatpush1.msra.mxu0 %v472
        %v474 = vand.u32 %v252, 4294901760
        %v475 = vsub.f32 %v252, %v474
        %v476 = vand.u32 %v475, 4294901760
        %v477 = vsub.f32 %v475, %v476
        %v478 = vand.u32 %v477, 4294901760
        %479 = vmatprep.subr.mxu0 %v478
        %v480 = vand.u32 %v251, 4294901760
        %v481 = vsub.f32 %v251, %v480
        %v482 = vand.u32 %v481, 4294901760
        %v483 = vsub.f32 %v481, %v482
        %v484 = vand.u32 %v483, 4294901760
        %485 = vmatpush1.msra.mxu0 %v484
        %v486 = vand.u32 %v250, 4294901760
        %v487 = vsub.f32 %v250, %v486
        %v488 = vand.u32 %v487, 4294901760
        %v489 = vsub.f32 %v487, %v488
        %v490 = vand.u32 %v489, 4294901760
        %491 = vmatprep.subr.mxu0 %v490
        %v492 = vand.u32 %v249, 4294901760
        %v493 = vsub.f32 %v249, %v492
        %v494 = vand.u32 %v493, 4294901760
        %v495 = vsub.f32 %v493, %v494
        %v496 = vand.u32 %v495, 4294901760
        %497 = vmatpush1.msra.mxu0 %v496
        %v498 = vand.u32 %v248, 4294901760
        %v499 = vsub.f32 %v248, %v498
        %v500 = vand.u32 %v499, 4294901760
        %v501 = vsub.f32 %v499, %v500
        %v502 = vand.u32 %v501, 4294901760
        %503 = vmatprep.subr.mxu0 %v502
        %v504 = vand.u32 %v247, 4294901760
        %v505 = vsub.f32 %v247, %v504
        %v506 = vand.u32 %v505, 4294901760
        %v507 = vsub.f32 %v505, %v506
        %v508 = vand.u32 %v507, 4294901760
        %509 = vmatpush1.msra.mxu0 %v508
        %v510 = vand.u32 %v246, 4294901760
        %v511 = vsub.f32 %v246, %v510
        %v512 = vand.u32 %v511, 4294901760
        %v513 = vsub.f32 %v511, %v512
        %v514 = vand.u32 %v513, 4294901760
        %515 = vmatprep.subr.mxu0 %v514
        %v516 = vand.u32 %v245, 4294901760
        %v517 = vsub.f32 %v245, %v516
        %v518 = vand.u32 %v517, 4294901760
        %v519 = vsub.f32 %v517, %v518
        %v520 = vand.u32 %v519, 4294901760
        %521 = vmatpush1.msra.mxu0 %v520
        %v522 = vand.u32 %v244, 4294901760
        %v523 = vsub.f32 %v244, %v522
        %v524 = vand.u32 %v523, 4294901760
        %v525 = vsub.f32 %v523, %v524
        %v526 = vand.u32 %v525, 4294901760
        %527 = vmatprep.subr.mxu0 %v526
        %v528 = vand.u32 %v243, 4294901760
        %v529 = vsub.f32 %v243, %v528
        %v530 = vand.u32 %v529, 4294901760
        %v531 = vsub.f32 %v529, %v530
        %v532 = vand.u32 %v531, 4294901760
        %533 = vmatpush1.msra.mxu0 %v532
        %v534 = vand.u32 %v242, 4294901760
        %v535 = vsub.f32 %v242, %v534
        %v536 = vand.u32 %v535, 4294901760
        %v537 = vsub.f32 %v535, %v536
        %v538 = vand.u32 %v537, 4294901760
        %539 = vmatprep.subr.mxu0 %v538
        %v540 = vand.u32 %v241, 4294901760
        %v541 = vsub.f32 %v241, %v540
        %v542 = vand.u32 %v541, 4294901760
        %v543 = vsub.f32 %v541, %v542
        %v544 = vand.u32 %v543, 4294901760
        %545 = vmatpush1.msra.mxu0 %v544
        %v546 = vand.u32 %v240, 4294901760
        %v547 = vsub.f32 %v240, %v546
        %v548 = vand.u32 %v547, 4294901760
        %v549 = vsub.f32 %v547, %v548
        %v550 = vand.u32 %v549, 4294901760
        %551 = vmatprep.subr.mxu0 %v550
        %v552 = vand.u32 %v239, 4294901760
        %v553 = vsub.f32 %v239, %v552
        %v554 = vand.u32 %v553, 4294901760
        %v555 = vsub.f32 %v553, %v554
        %v556 = vand.u32 %v555, 4294901760
        %557 = vmatpush1.msra.mxu0 %v556
        %v558 = vand.u32 %v238, 4294901760
        %v559 = vsub.f32 %v238, %v558
        %v560 = vand.u32 %v559, 4294901760
        %v561 = vsub.f32 %v559, %v560
        %v562 = vand.u32 %v561, 4294901760
        %563 = vmatprep.subr.mxu0 %v562
        %v564 = vand.u32 %v237, 4294901760
        %v565 = vsub.f32 %v237, %v564
        %v566 = vand.u32 %v565, 4294901760
        %v567 = vsub.f32 %v565, %v566
        %v568 = vand.u32 %v567, 4294901760
        %569 = vmatpush1.msra.mxu0 %v568
        %v570 = vand.u32 %v236, 4294901760
        %v571 = vsub.f32 %v236, %v570
        %v572 = vand.u32 %v571, 4294901760
        %v573 = vsub.f32 %v571, %v572
        %v574 = vand.u32 %v573, 4294901760
        %575 = vmatprep.subr.mxu0 %v574
        %v576 = vand.u32 %v235, 4294901760
        %v577 = vsub.f32 %v235, %v576
        %v578 = vand.u32 %v577, 4294901760
        %v579 = vsub.f32 %v577, %v578
        %v580 = vand.u32 %v579, 4294901760
        %581 = vmatpush1.msra.mxu0 %v580
        %v582 = vand.u32 %v234, 4294901760
        %v583 = vsub.f32 %v234, %v582
        %v584 = vand.u32 %v583, 4294901760
        %v585 = vsub.f32 %v583, %v584
        %v586 = vand.u32 %v585, 4294901760
        %587 = vmatprep.subr.mxu0 %v586
        %v588 = vand.u32 %v233, 4294901760
        %v589 = vsub.f32 %v233, %v588
        %v590 = vand.u32 %v589, 4294901760
        %v591 = vsub.f32 %v589, %v590
        %v592 = vand.u32 %v591, 4294901760
        %593 = vmatpush1.msra.mxu0 %v592
        %v594 = vand.u32 %v232, 4294901760
        %v595 = vsub.f32 %v232, %v594
        %v596 = vand.u32 %v595, 4294901760
        %v597 = vsub.f32 %v595, %v596
        %v598 = vand.u32 %v597, 4294901760
        %599 = vmatprep.subr.mxu0 %v598
        %v600 = vand.u32 %v231, 4294901760
        %v601 = vsub.f32 %v231, %v600
        %v602 = vand.u32 %v601, 4294901760
        %v603 = vsub.f32 %v601, %v602
        %v604 = vand.u32 %v603, 4294901760
        %605 = vmatpush1.msra.mxu0 %v604
        %v606 = vand.u32 %v230, 4294901760
        %v607 = vsub.f32 %v230, %v606
        %v608 = vand.u32 %v607, 4294901760
        %v609 = vsub.f32 %v607, %v608
        %v610 = vand.u32 %v609, 4294901760
        %611 = vmatprep.subr.mxu0 %v610
        %v612 = vand.u32 %v229, 4294901760
        %v613 = vsub.f32 %v229, %v612
        %v614 = vand.u32 %v613, 4294901760
        %v615 = vsub.f32 %v613, %v614
        %v616 = vand.u32 %v615, 4294901760
        %617 = vmatpush1.msra.mxu0 %v616
        %v618 = vand.u32 %v228, 4294901760
        %v619 = vsub.f32 %v228, %v618
        %v620 = vand.u32 %v619, 4294901760
        %v621 = vsub.f32 %v619, %v620
        %v622 = vand.u32 %v621, 4294901760
        %623 = vmatprep.subr.mxu0 %v622
        %v624 = vand.u32 %v227, 4294901760
        %v625 = vsub.f32 %v227, %v624
        %v626 = vand.u32 %v625, 4294901760
        %v627 = vsub.f32 %v625, %v626
        %v628 = vand.u32 %v627, 4294901760
        %629 = vmatpush1.msra.mxu0 %v628
        %v630 = vand.u32 %v226, 4294901760
        %v631 = vsub.f32 %v226, %v630
        %v632 = vand.u32 %v631, 4294901760
        %v633 = vsub.f32 %v631, %v632
        %v634 = vand.u32 %v633, 4294901760
        %635 = vmatprep.subr.mxu0 %v634
        %v636 = vand.u32 %v225, 4294901760
        %v637 = vsub.f32 %v225, %v636
        %v638 = vand.u32 %v637, 4294901760
        %v639 = vsub.f32 %v637, %v638
        %v640 = vand.u32 %v639, 4294901760
        %641 = vmatpush1.msra.mxu0 %v640
        %v642 = vand.u32 %v288, 4294901760
        %v643 = vsub.f32 %v288, %v642
        %v644 = vand.u32 %v643, 4294901760
        %v645 = vsub.f32 %v643, %v644
        %v646 = vand.u32 %v645, 4294901760
        %647 = vmatprep.subr.mxu0 %v646
        %v648 = vand.u32 %v287, 4294901760
        %v649 = vsub.f32 %v287, %v648
        %v650 = vand.u32 %v649, 4294901760
        %v651 = vsub.f32 %v649, %v650
        %v652 = vand.u32 %v651, 4294901760
        %653 = vmatpush2.msra.mxu0 %v652
        %v654 = vand.u32 %v286, 4294901760
        %v655 = vsub.f32 %v286, %v654
        %v656 = vand.u32 %v655, 4294901760
        %v657 = vsub.f32 %v655, %v656
        %v658 = vand.u32 %v657, 4294901760
        %659 = vmatprep.subr.mxu0 %v658
        %v660 = vand.u32 %v285, 4294901760
        %v661 = vsub.f32 %v285, %v660
        %v662 = vand.u32 %v661, 4294901760
        %v663 = vsub.f32 %v661, %v662
        %v664 = vand.u32 %v663, 4294901760
        %665 = vmatpush2.msra.mxu0 %v664
        %v666 = vand.u32 %v284, 4294901760
        %v667 = vsub.f32 %v284, %v666
        %v668 = vand.u32 %v667, 4294901760
        %v669 = vsub.f32 %v667, %v668
        %v670 = vand.u32 %v669, 4294901760
        %671 = vmatprep.subr.mxu0 %v670
        %v672 = vand.u32 %v283, 4294901760
        %v673 = vsub.f32 %v283, %v672
        %v674 = vand.u32 %v673, 4294901760
        %v675 = vsub.f32 %v673, %v674
        %v676 = vand.u32 %v675, 4294901760
        %677 = vmatpush2.msra.mxu0 %v676
        %v678 = vand.u32 %v282, 4294901760
        %v679 = vsub.f32 %v282, %v678
        %v680 = vand.u32 %v679, 4294901760
        %v681 = vsub.f32 %v679, %v680
        %v682 = vand.u32 %v681, 4294901760
        %683 = vmatprep.subr.mxu0 %v682
        %v684 = vand.u32 %v281, 4294901760
        %v685 = vsub.f32 %v281, %v684
        %v686 = vand.u32 %v685, 4294901760
        %v687 = vsub.f32 %v685, %v686
        %v688 = vand.u32 %v687, 4294901760
        %689 = vmatpush2.msra.mxu0 %v688
        %v690 = vand.u32 %v280, 4294901760
        %v691 = vsub.f32 %v280, %v690
        %v692 = vand.u32 %v691, 4294901760
        %v693 = vsub.f32 %v691, %v692
        %v694 = vand.u32 %v693, 4294901760
        %695 = vmatprep.subr.mxu0 %v694
        %v696 = vand.u32 %v279, 4294901760
        %v697 = vsub.f32 %v279, %v696
        %v698 = vand.u32 %v697, 4294901760
        %v699 = vsub.f32 %v697, %v698
        %v700 = vand.u32 %v699, 4294901760
        %701 = vmatpush2.msra.mxu0 %v700
        %v702 = vand.u32 %v278, 4294901760
        %v703 = vsub.f32 %v278, %v702
        %v704 = vand.u32 %v703, 4294901760
        %v705 = vsub.f32 %v703, %v704
        %v706 = vand.u32 %v705, 4294901760
        %707 = vmatprep.subr.mxu0 %v706
        %v708 = vand.u32 %v277, 4294901760
        %v709 = vsub.f32 %v277, %v708
        %v710 = vand.u32 %v709, 4294901760
        %v711 = vsub.f32 %v709, %v710
        %v712 = vand.u32 %v711, 4294901760
        %713 = vmatpush2.msra.mxu0 %v712
        %v714 = vand.u32 %v276, 4294901760
        %v715 = vsub.f32 %v276, %v714
        %v716 = vand.u32 %v715, 4294901760
        %v717 = vsub.f32 %v715, %v716
        %v718 = vand.u32 %v717, 4294901760
        %719 = vmatprep.subr.mxu0 %v718
        %v720 = vand.u32 %v275, 4294901760
        %v721 = vsub.f32 %v275, %v720
        %v722 = vand.u32 %v721, 4294901760
        %v723 = vsub.f32 %v721, %v722
        %v724 = vand.u32 %v723, 4294901760
        %725 = vmatpush2.msra.mxu0 %v724
        %v726 = vand.u32 %v274, 4294901760
        %v727 = vsub.f32 %v274, %v726
        %v728 = vand.u32 %v727, 4294901760
        %v729 = vsub.f32 %v727, %v728
        %v730 = vand.u32 %v729, 4294901760
        %731 = vmatprep.subr.mxu0 %v730
        %v732 = vand.u32 %v273, 4294901760
        %v733 = vsub.f32 %v273, %v732
        %v734 = vand.u32 %v733, 4294901760
        %v735 = vsub.f32 %v733, %v734
        %v736 = vand.u32 %v735, 4294901760
        %737 = vmatpush2.msra.mxu0 %v736
        %v738 = vand.u32 %v272, 4294901760
        %v739 = vsub.f32 %v272, %v738
        %v740 = vand.u32 %v739, 4294901760
        %v741 = vsub.f32 %v739, %v740
        %v742 = vand.u32 %v741, 4294901760
        %743 = vmatprep.subr.mxu0 %v742
        %v744 = vand.u32 %v271, 4294901760
        %v745 = vsub.f32 %v271, %v744
        %v746 = vand.u32 %v745, 4294901760
        %v747 = vsub.f32 %v745, %v746
        %v748 = vand.u32 %v747, 4294901760
        %749 = vmatpush2.msra.mxu0 %v748
        %v750 = vand.u32 %v270, 4294901760
        %v751 = vsub.f32 %v270, %v750
        %v752 = vand.u32 %v751, 4294901760
        %v753 = vsub.f32 %v751, %v752
        %v754 = vand.u32 %v753, 4294901760
        %755 = vmatprep.subr.mxu0 %v754
        %v756 = vand.u32 %v269, 4294901760
        %v757 = vsub.f32 %v269, %v756
        %v758 = vand.u32 %v757, 4294901760
        %v759 = vsub.f32 %v757, %v758
        %v760 = vand.u32 %v759, 4294901760
        %761 = vmatpush2.msra.mxu0 %v760
        %v762 = vand.u32 %v268, 4294901760
        %v763 = vsub.f32 %v268, %v762
        %v764 = vand.u32 %v763, 4294901760
        %v765 = vsub.f32 %v763, %v764
        %v766 = vand.u32 %v765, 4294901760
        %767 = vmatprep.subr.mxu0 %v766
        %v768 = vand.u32 %v267, 4294901760
        %v769 = vsub.f32 %v267, %v768
        %v770 = vand.u32 %v769, 4294901760
        %v771 = vsub.f32 %v769, %v770
        %v772 = vand.u32 %v771, 4294901760
        %773 = vmatpush2.msra.mxu0 %v772
        %v774 = vand.u32 %v266, 4294901760
        %v775 = vsub.f32 %v266, %v774
        %v776 = vand.u32 %v775, 4294901760
        %v777 = vsub.f32 %v775, %v776
        %v778 = vand.u32 %v777, 4294901760
        %779 = vmatprep.subr.mxu0 %v778
        %v780 = vand.u32 %v265, 4294901760
        %v781 = vsub.f32 %v265, %v780
        %v782 = vand.u32 %v781, 4294901760
        %v783 = vsub.f32 %v781, %v782
        %v784 = vand.u32 %v783, 4294901760
        %785 = vmatpush2.msra.mxu0 %v784
        %v786 = vand.u32 %v264, 4294901760
        %v787 = vsub.f32 %v264, %v786
        %v788 = vand.u32 %v787, 4294901760
        %v789 = vsub.f32 %v787, %v788
        %v790 = vand.u32 %v789, 4294901760
        %791 = vmatprep.subr.mxu0 %v790
        %v792 = vand.u32 %v263, 4294901760
        %v793 = vsub.f32 %v263, %v792
        %v794 = vand.u32 %v793, 4294901760
        %v795 = vsub.f32 %v793, %v794
        %v796 = vand.u32 %v795, 4294901760
        %797 = vmatpush2.msra.mxu0 %v796
        %v798 = vand.u32 %v262, 4294901760
        %v799 = vsub.f32 %v262, %v798
        %v800 = vand.u32 %v799, 4294901760
        %v801 = vsub.f32 %v799, %v800
        %v802 = vand.u32 %v801, 4294901760
        %803 = vmatprep.subr.mxu0 %v802
        %v804 = vand.u32 %v261, 4294901760
        %v805 = vsub.f32 %v261, %v804
        %v806 = vand.u32 %v805, 4294901760
        %v807 = vsub.f32 %v805, %v806
        %v808 = vand.u32 %v807, 4294901760
        %809 = vmatpush2.msra.mxu0 %v808
        %v810 = vand.u32 %v260, 4294901760
        %v811 = vsub.f32 %v260, %v810
        %v812 = vand.u32 %v811, 4294901760
        %v813 = vsub.f32 %v811, %v812
        %v814 = vand.u32 %v813, 4294901760
        %815 = vmatprep.subr.mxu0 %v814
        %v816 = vand.u32 %v259, 4294901760
        %v817 = vsub.f32 %v259, %v816
        %v818 = vand.u32 %v817, 4294901760
        %v819 = vsub.f32 %v817, %v818
        %v820 = vand.u32 %v819, 4294901760
        %821 = vmatpush2.msra.mxu0 %v820
        %v822 = vand.u32 %v258, 4294901760
        %v823 = vsub.f32 %v258, %v822
        %v824 = vand.u32 %v823, 4294901760
        %v825 = vsub.f32 %v823, %v824
        %v826 = vand.u32 %v825, 4294901760
        %827 = vmatprep.subr.mxu0 %v826
        %v828 = vand.u32 %v257, 4294901760
        %v829 = vsub.f32 %v257, %v828
        %v830 = vand.u32 %v829, 4294901760
        %v831 = vsub.f32 %v829, %v830
        %v832 = vand.u32 %v831, 4294901760
        %833 = vmatpush2.msra.mxu0 %v832
        %v834 = vand.u32 %v222, 4294901760
        %835 = vmatprep.mubr.f32.mxu0 %v834
        %v836 = vand.u32 %v221, 4294901760
        %837 = vmatmul.mubr.f32.gmra.mxu0 %v836
        %v838 = vpop.f32.mrf.mxu0
        %v839 = vadd.f32 %v430, %v838
        %v840 = vpop.f32.mrf.mxu0
        %v841 = vadd.f32 %v432, %v840
        %v842 = vand.u32 %v224, 4294901760
        %843 = vmatprep.mubr.f32.mxu0 %v842
        %v844 = vand.u32 %v223, 4294901760
        %845 = vmatmul.mubr.f32.gmra.mxu0 %v844
        %v846 = vpop.f32.mrf.mxu0
        %v847 = vadd.f32 %v446, %v846
        %v848 = vpop.f32.mrf.mxu0
        %v849 = vadd.f32 %v448, %v848
        %850 = vdwg.mxu0
        %v851 = vand.u32 %v256, 4294901760
        %v852 = vsub.f32 %v256, %v851
        %853 = vmatprep.subr.mxu0 %v852
        %v854 = vand.u32 %v255, 4294901760
        %v855 = vsub.f32 %v255, %v854
        %856 = vmatpush1.msra.mxu0 %v855
        %v857 = vand.u32 %v254, 4294901760
        %v858 = vsub.f32 %v254, %v857
        %859 = vmatprep.subr.mxu0 %v858
        %v860 = vand.u32 %v253, 4294901760
        %v861 = vsub.f32 %v253, %v860
        %862 = vmatpush1.msra.mxu0 %v861
        %v863 = vand.u32 %v252, 4294901760
        %v864 = vsub.f32 %v252, %v863
        %865 = vmatprep.subr.mxu0 %v864
        %v866 = vand.u32 %v251, 4294901760
        %v867 = vsub.f32 %v251, %v866
        %868 = vmatpush1.msra.mxu0 %v867
        %v869 = vand.u32 %v250, 4294901760
        %v870 = vsub.f32 %v250, %v869
        %871 = vmatprep.subr.mxu0 %v870
        %v872 = vand.u32 %v249, 4294901760
        %v873 = vsub.f32 %v249, %v872
        %874 = vmatpush1.msra.mxu0 %v873
        %v875 = vand.u32 %v248, 4294901760
        %v876 = vsub.f32 %v248, %v875
        %877 = vmatprep.subr.mxu0 %v876
        %v878 = vand.u32 %v247, 4294901760
        %v879 = vsub.f32 %v247, %v878
        %880 = vmatpush1.msra.mxu0 %v879
        %v881 = vand.u32 %v246, 4294901760
        %v882 = vsub.f32 %v246, %v881
        %883 = vmatprep.subr.mxu0 %v882
        %v884 = vand.u32 %v245, 4294901760
        %v885 = vsub.f32 %v245, %v884
        %886 = vmatpush1.msra.mxu0 %v885
        %v887 = vand.u32 %v244, 4294901760
        %v888 = vsub.f32 %v244, %v887
        %889 = vmatprep.subr.mxu0 %v888
        %v890 = vand.u32 %v243, 4294901760
        %v891 = vsub.f32 %v243, %v890
        %892 = vmatpush1.msra.mxu0 %v891
        %v893 = vand.u32 %v242, 4294901760
        %v894 = vsub.f32 %v242, %v893
        %895 = vmatprep.subr.mxu0 %v894
        %v896 = vand.u32 %v241, 4294901760
        %v897 = vsub.f32 %v241, %v896
        %898 = vmatpush1.msra.mxu0 %v897
        %v899 = vand.u32 %v240, 4294901760
        %v900 = vsub.f32 %v240, %v899
        %901 = vmatprep.subr.mxu0 %v900
        %v902 = vand.u32 %v239, 4294901760
        %v903 = vsub.f32 %v239, %v902
        %904 = vmatpush1.msra.mxu0 %v903
        %v905 = vand.u32 %v238, 4294901760
        %v906 = vsub.f32 %v238, %v905
        %907 = vmatprep.subr.mxu0 %v906
        %v908 = vand.u32 %v237, 4294901760
        %v909 = vsub.f32 %v237, %v908
        %910 = vmatpush1.msra.mxu0 %v909
        %v911 = vand.u32 %v236, 4294901760
        %v912 = vsub.f32 %v236, %v911
        %913 = vmatprep.subr.mxu0 %v912
        %v914 = vand.u32 %v235, 4294901760
        %v915 = vsub.f32 %v235, %v914
        %916 = vmatpush1.msra.mxu0 %v915
        %v917 = vand.u32 %v234, 4294901760
        %v918 = vsub.f32 %v234, %v917
        %919 = vmatprep.subr.mxu0 %v918
        %v920 = vand.u32 %v233, 4294901760
        %v921 = vsub.f32 %v233, %v920
        %922 = vmatpush1.msra.mxu0 %v921
        %v923 = vand.u32 %v232, 4294901760
        %v924 = vsub.f32 %v232, %v923
        %925 = vmatprep.subr.mxu0 %v924
        %v926 = vand.u32 %v231, 4294901760
        %v927 = vsub.f32 %v231, %v926
        %928 = vmatpush1.msra.mxu0 %v927
        %v929 = vand.u32 %v230, 4294901760
        %v930 = vsub.f32 %v230, %v929
        %931 = vmatprep.subr.mxu0 %v930
        %v932 = vand.u32 %v229, 4294901760
        %v933 = vsub.f32 %v229, %v932
        %934 = vmatpush1.msra.mxu0 %v933
        %v935 = vand.u32 %v228, 4294901760
        %v936 = vsub.f32 %v228, %v935
        %937 = vmatprep.subr.mxu0 %v936
        %v938 = vand.u32 %v227, 4294901760
        %v939 = vsub.f32 %v227, %v938
        %940 = vmatpush1.msra.mxu0 %v939
        %v941 = vand.u32 %v226, 4294901760
        %v942 = vsub.f32 %v226, %v941
        %943 = vmatprep.subr.mxu0 %v942
        %v944 = vand.u32 %v225, 4294901760
        %v945 = vsub.f32 %v225, %v944
        %946 = vmatpush1.msra.mxu0 %v945
        %v947 = vand.u32 %v288, 4294901760
        %v948 = vsub.f32 %v288, %v947
        %949 = vmatprep.subr.mxu0 %v948
        %v950 = vand.u32 %v287, 4294901760
        %v951 = vsub.f32 %v287, %v950
        %952 = vmatpush2.msra.mxu0 %v951
        %v953 = vand.u32 %v286, 4294901760
        %v954 = vsub.f32 %v286, %v953
        %955 = vmatprep.subr.mxu0 %v954
        %v956 = vand.u32 %v285, 4294901760
        %v957 = vsub.f32 %v285, %v956
        %958 = vmatpush2.msra.mxu0 %v957
        %v959 = vand.u32 %v284, 4294901760
        %v960 = vsub.f32 %v284, %v959
        %961 = vmatprep.subr.mxu0 %v960
        %v962 = vand.u32 %v283, 4294901760
        %v963 = vsub.f32 %v283, %v962
        %964 = vmatpush2.msra.mxu0 %v963
        %v965 = vand.u32 %v282, 4294901760
        %v966 = vsub.f32 %v282, %v965
        %967 = vmatprep.subr.mxu0 %v966
        %v968 = vand.u32 %v281, 4294901760
        %v969 = vsub.f32 %v281, %v968
        %970 = vmatpush2.msra.mxu0 %v969
        %v971 = vand.u32 %v280, 4294901760
        %v972 = vsub.f32 %v280, %v971
        %973 = vmatprep.subr.mxu0 %v972
        %v974 = vand.u32 %v279, 4294901760
        %v975 = vsub.f32 %v279, %v974
        %976 = vmatpush2.msra.mxu0 %v975
        %v977 = vand.u32 %v278, 4294901760
        %v978 = vsub.f32 %v278, %v977
        %979 = vmatprep.subr.mxu0 %v978
        %v980 = vand.u32 %v277, 4294901760
        %v981 = vsub.f32 %v277, %v980
        %982 = vmatpush2.msra.mxu0 %v981
        %v983 = vand.u32 %v276, 4294901760
        %v984 = vsub.f32 %v276, %v983
        %985 = vmatprep.subr.mxu0 %v984
        %v986 = vand.u32 %v275, 4294901760
        %v987 = vsub.f32 %v275, %v986
        %988 = vmatpush2.msra.mxu0 %v987
        %v989 = vand.u32 %v274, 4294901760
        %v990 = vsub.f32 %v274, %v989
        %991 = vmatprep.subr.mxu0 %v990
        %v992 = vand.u32 %v273, 4294901760
        %v993 = vsub.f32 %v273, %v992
        %994 = vmatpush2.msra.mxu0 %v993
        %v995 = vand.u32 %v272, 4294901760
        %v996 = vsub.f32 %v272, %v995
        %997 = vmatprep.subr.mxu0 %v996
        %v998 = vand.u32 %v271, 4294901760
        %v999 = vsub.f32 %v271, %v998
        %1000 = vmatpush2.msra.mxu0 %v999
        %v1001 = vand.u32 %v270, 4294901760
        %v1002 = vsub.f32 %v270, %v1001
        %1003 = vmatprep.subr.mxu0 %v1002
        %v1004 = vand.u32 %v269, 4294901760
        %v1005 = vsub.f32 %v269, %v1004
        %1006 = vmatpush2.msra.mxu0 %v1005
        %v1007 = vand.u32 %v268, 4294901760
        %v1008 = vsub.f32 %v268, %v1007
        %1009 = vmatprep.subr.mxu0 %v1008
        %v1010 = vand.u32 %v267, 4294901760
        %v1011 = vsub.f32 %v267, %v1010
        %1012 = vmatpush2.msra.mxu0 %v1011
        %v1013 = vand.u32 %v266, 4294901760
        %v1014 = vsub.f32 %v266, %v1013
        %1015 = vmatprep.subr.mxu0 %v1014
        %v1016 = vand.u32 %v265, 4294901760
        %v1017 = vsub.f32 %v265, %v1016
        %1018 = vmatpush2.msra.mxu0 %v1017
        %v1019 = vand.u32 %v264, 4294901760
        %v1020 = vsub.f32 %v264, %v1019
        %1021 = vmatprep.subr.mxu0 %v1020
        %v1022 = vand.u32 %v263, 4294901760
        %v1023 = vsub.f32 %v263, %v1022
        %1024 = vmatpush2.msra.mxu0 %v1023
        %v1025 = vand.u32 %v262, 4294901760
        %v1026 = vsub.f32 %v262, %v1025
        %1027 = vmatprep.subr.mxu0 %v1026
        %v1028 = vand.u32 %v261, 4294901760
        %v1029 = vsub.f32 %v261, %v1028
        %1030 = vmatpush2.msra.mxu0 %v1029
        %v1031 = vand.u32 %v260, 4294901760
        %v1032 = vsub.f32 %v260, %v1031
        %1033 = vmatprep.subr.mxu0 %v1032
        %v1034 = vand.u32 %v259, 4294901760
        %v1035 = vsub.f32 %v259, %v1034
        %1036 = vmatpush2.msra.mxu0 %v1035
        %v1037 = vand.u32 %v258, 4294901760
        %v1038 = vsub.f32 %v258, %v1037
        %1039 = vmatprep.subr.mxu0 %v1038
        %v1040 = vand.u32 %v257, 4294901760
        %v1041 = vsub.f32 %v257, %v1040
        %1042 = vmatpush2.msra.mxu0 %v1041
        %v1043 = vand.u32 %v222, 4294901760
        %v1044 = vsub.f32 %v222, %v1043
        %1045 = vmatprep.mubr.f32.mxu0 %v1044
        %v1046 = vand.u32 %v221, 4294901760
        %v1047 = vsub.f32 %v221, %v1046
        %1048 = vmatmul.mubr.f32.gmra.mxu0 %v1047
        %v1049 = vpop.f32.mrf.mxu0
        %v1050 = vadd.f32 %v839, %v1049
        %v1051 = vpop.f32.mrf.mxu0
        %v1052 = vadd.f32 %v841, %v1051
        %v1053 = vand.u32 %v224, 4294901760
        %v1054 = vsub.f32 %v224, %v1053
        %1055 = vmatprep.mubr.f32.mxu0 %v1054
        %v1056 = vand.u32 %v223, 4294901760
        %v1057 = vsub.f32 %v223, %v1056
        %1058 = vmatmul.mubr.f32.gmra.mxu0 %v1057
        %v1059 = vpop.f32.mrf.mxu0
        %v1060 = vadd.f32 %v847, %v1059
        %v1061 = vpop.f32.mrf.mxu0
        %v1062 = vadd.f32 %v849, %v1061
        %1063 = vdwg.mxu0
        %v1064 = vand.u32 %v256, 4294901760
        %1065 = vmatprep.subr.mxu0 %v1064
        %v1066 = vand.u32 %v255, 4294901760
        %1067 = vmatpush1.msra.mxu0 %v1066
        %v1068 = vand.u32 %v254, 4294901760
        %1069 = vmatprep.subr.mxu0 %v1068
        %v1070 = vand.u32 %v253, 4294901760
        %1071 = vmatpush1.msra.mxu0 %v1070
        %v1072 = vand.u32 %v252, 4294901760
        %1073 = vmatprep.subr.mxu0 %v1072
        %v1074 = vand.u32 %v251, 4294901760
        %1075 = vmatpush1.msra.mxu0 %v1074
        %v1076 = vand.u32 %v250, 4294901760
        %1077 = vmatprep.subr.mxu0 %v1076
        %v1078 = vand.u32 %v249, 4294901760
        %1079 = vmatpush1.msra.mxu0 %v1078
        %v1080 = vand.u32 %v248, 4294901760
        %1081 = vmatprep.subr.mxu0 %v1080
        %v1082 = vand.u32 %v247, 4294901760
        %1083 = vmatpush1.msra.mxu0 %v1082
        %v1084 = vand.u32 %v246, 4294901760
        %1085 = vmatprep.subr.mxu0 %v1084
        %v1086 = vand.u32 %v245, 4294901760
        %1087 = vmatpush1.msra.mxu0 %v1086
        %v1088 = vand.u32 %v244, 4294901760
        %1089 = vmatprep.subr.mxu0 %v1088
        %v1090 = vand.u32 %v243, 4294901760
        %1091 = vmatpush1.msra.mxu0 %v1090
        %v1092 = vand.u32 %v242, 4294901760
        %1093 = vmatprep.subr.mxu0 %v1092
        %v1094 = vand.u32 %v241, 4294901760
        %1095 = vmatpush1.msra.mxu0 %v1094
        %v1096 = vand.u32 %v240, 4294901760
        %1097 = vmatprep.subr.mxu0 %v1096
        %v1098 = vand.u32 %v239, 4294901760
        %1099 = vmatpush1.msra.mxu0 %v1098
        %v1100 = vand.u32 %v238, 4294901760
        %1101 = vmatprep.subr.mxu0 %v1100
        %v1102 = vand.u32 %v237, 4294901760
        %1103 = vmatpush1.msra.mxu0 %v1102
        %v1104 = vand.u32 %v236, 4294901760
        %1105 = vmatprep.subr.mxu0 %v1104
        %v1106 = vand.u32 %v235, 4294901760
        %1107 = vmatpush1.msra.mxu0 %v1106
        %v1108 = vand.u32 %v234, 4294901760
        %1109 = vmatprep.subr.mxu0 %v1108
        %v1110 = vand.u32 %v233, 4294901760
        %1111 = vmatpush1.msra.mxu0 %v1110
        %v1112 = vand.u32 %v232, 4294901760
        %1113 = vmatprep.subr.mxu0 %v1112
        %v1114 = vand.u32 %v231, 4294901760
        %1115 = vmatpush1.msra.mxu0 %v1114
        %v1116 = vand.u32 %v230, 4294901760
        %1117 = vmatprep.subr.mxu0 %v1116
        %v1118 = vand.u32 %v229, 4294901760
        %1119 = vmatpush1.msra.mxu0 %v1118
        %v1120 = vand.u32 %v228, 4294901760
        %1121 = vmatprep.subr.mxu0 %v1120
        %v1122 = vand.u32 %v227, 4294901760
        %1123 = vmatpush1.msra.mxu0 %v1122
        %v1124 = vand.u32 %v226, 4294901760
        %1125 = vmatprep.subr.mxu0 %v1124
        %v1126 = vand.u32 %v225, 4294901760
        %1127 = vmatpush1.msra.mxu0 %v1126
        %v1128 = vand.u32 %v288, 4294901760
        %1129 = vmatprep.subr.mxu0 %v1128
        %v1130 = vand.u32 %v287, 4294901760
        %1131 = vmatpush2.msra.mxu0 %v1130
        %v1132 = vand.u32 %v286, 4294901760
        %1133 = vmatprep.subr.mxu0 %v1132
        %v1134 = vand.u32 %v285, 4294901760
        %1135 = vmatpush2.msra.mxu0 %v1134
        %v1136 = vand.u32 %v284, 4294901760
        %1137 = vmatprep.subr.mxu0 %v1136
        %v1138 = vand.u32 %v283, 4294901760
        %1139 = vmatpush2.msra.mxu0 %v1138
        %v1140 = vand.u32 %v282, 4294901760
        %1141 = vmatprep.subr.mxu0 %v1140
        %v1142 = vand.u32 %v281, 4294901760
        %1143 = vmatpush2.msra.mxu0 %v1142
        %v1144 = vand.u32 %v280, 4294901760
        %1145 = vmatprep.subr.mxu0 %v1144
        %v1146 = vand.u32 %v279, 4294901760
        %1147 = vmatpush2.msra.mxu0 %v1146
        %v1148 = vand.u32 %v278, 4294901760
        %1149 = vmatprep.subr.mxu0 %v1148
        %v1150 = vand.u32 %v277, 4294901760
        %1151 = vmatpush2.msra.mxu0 %v1150
        %v1152 = vand.u32 %v276, 4294901760
        %1153 = vmatprep.subr.mxu0 %v1152
        %v1154 = vand.u32 %v275, 4294901760
        %1155 = vmatpush2.msra.mxu0 %v1154
        %v1156 = vand.u32 %v274, 4294901760
        %1157 = vmatprep.subr.mxu0 %v1156
        %v1158 = vand.u32 %v273, 4294901760
        %1159 = vmatpush2.msra.mxu0 %v1158
        %v1160 = vand.u32 %v272, 4294901760
        %1161 = vmatprep.subr.mxu0 %v1160
        %v1162 = vand.u32 %v271, 4294901760
        %1163 = vmatpush2.msra.mxu0 %v1162
        %v1164 = vand.u32 %v270, 4294901760
        %1165 = vmatprep.subr.mxu0 %v1164
        %v1166 = vand.u32 %v269, 4294901760
        %1167 = vmatpush2.msra.mxu0 %v1166
        %v1168 = vand.u32 %v268, 4294901760
        %1169 = vmatprep.subr.mxu0 %v1168
        %v1170 = vand.u32 %v267, 4294901760
        %1171 = vmatpush2.msra.mxu0 %v1170
        %v1172 = vand.u32 %v266, 4294901760
        %1173 = vmatprep.subr.mxu0 %v1172
        %v1174 = vand.u32 %v265, 4294901760
        %1175 = vmatpush2.msra.mxu0 %v1174
        %v1176 = vand.u32 %v264, 4294901760
        %1177 = vmatprep.subr.mxu0 %v1176
        %v1178 = vand.u32 %v263, 4294901760
        %1179 = vmatpush2.msra.mxu0 %v1178
        %v1180 = vand.u32 %v262, 4294901760
        %1181 = vmatprep.subr.mxu0 %v1180
        %v1182 = vand.u32 %v261, 4294901760
        %1183 = vmatpush2.msra.mxu0 %v1182
        %v1184 = vand.u32 %v260, 4294901760
        %1185 = vmatprep.subr.mxu0 %v1184
        %v1186 = vand.u32 %v259, 4294901760
        %1187 = vmatpush2.msra.mxu0 %v1186
        %v1188 = vand.u32 %v258, 4294901760
        %1189 = vmatprep.subr.mxu0 %v1188
        %v1190 = vand.u32 %v257, 4294901760
        %1191 = vmatpush2.msra.mxu0 %v1190
        %v1192 = vand.u32 %v222, 4294901760
        %v1193 = vsub.f32 %v222, %v1192
        %v1194 = vand.u32 %v1193, 4294901760
        %1195 = vmatprep.mubr.f32.mxu0 %v1194
        %v1196 = vand.u32 %v221, 4294901760
        %v1197 = vsub.f32 %v221, %v1196
        %v1198 = vand.u32 %v1197, 4294901760
        %1199 = vmatmul.mubr.f32.gmra.mxu0 %v1198
        %v1200 = vpop.f32.mrf.mxu0
        %v1201 = vadd.f32 %v1050, %v1200
        %v1202 = vpop.f32.mrf.mxu0
        %v1203 = vadd.f32 %v1052, %v1202
        %v1204 = vand.u32 %v224, 4294901760
        %v1205 = vsub.f32 %v224, %v1204
        %v1206 = vand.u32 %v1205, 4294901760
        %1207 = vmatprep.mubr.f32.mxu0 %v1206
        %v1208 = vand.u32 %v223, 4294901760
        %v1209 = vsub.f32 %v223, %v1208
        %v1210 = vand.u32 %v1209, 4294901760
        %1211 = vmatmul.mubr.f32.gmra.mxu0 %v1210
        %v1212 = vpop.f32.mrf.mxu0
        %v1213 = vadd.f32 %v1060, %v1212
        %v1214 = vpop.f32.mrf.mxu0
        %v1215 = vadd.f32 %v1062, %v1214
        %1216 = vdwg.mxu0
        %v1217 = vand.u32 %v256, 4294901760
        %v1218 = vsub.f32 %v256, %v1217
        %v1219 = vand.u32 %v1218, 4294901760
        %1220 = vmatprep.subr.mxu0 %v1219
        %v1221 = vand.u32 %v255, 4294901760
        %v1222 = vsub.f32 %v255, %v1221
        %v1223 = vand.u32 %v1222, 4294901760
        %1224 = vmatpush1.msra.mxu0 %v1223
        %v1225 = vand.u32 %v254, 4294901760
        %v1226 = vsub.f32 %v254, %v1225
        %v1227 = vand.u32 %v1226, 4294901760
        %1228 = vmatprep.subr.mxu0 %v1227
        %v1229 = vand.u32 %v253, 4294901760
        %v1230 = vsub.f32 %v253, %v1229
        %v1231 = vand.u32 %v1230, 4294901760
        %1232 = vmatpush1.msra.mxu0 %v1231
        %v1233 = vand.u32 %v252, 4294901760
        %v1234 = vsub.f32 %v252, %v1233
        %v1235 = vand.u32 %v1234, 4294901760
        %1236 = vmatprep.subr.mxu0 %v1235
        %v1237 = vand.u32 %v251, 4294901760
        %v1238 = vsub.f32 %v251, %v1237
        %v1239 = vand.u32 %v1238, 4294901760
        %1240 = vmatpush1.msra.mxu0 %v1239
        %v1241 = vand.u32 %v250, 4294901760
        %v1242 = vsub.f32 %v250, %v1241
        %v1243 = vand.u32 %v1242, 4294901760
        %1244 = vmatprep.subr.mxu0 %v1243
        %v1245 = vand.u32 %v249, 4294901760
        %v1246 = vsub.f32 %v249, %v1245
        %v1247 = vand.u32 %v1246, 4294901760
        %1248 = vmatpush1.msra.mxu0 %v1247
        %v1249 = vand.u32 %v248, 4294901760
        %v1250 = vsub.f32 %v248, %v1249
        %v1251 = vand.u32 %v1250, 4294901760
        %1252 = vmatprep.subr.mxu0 %v1251
        %v1253 = vand.u32 %v247, 4294901760
        %v1254 = vsub.f32 %v247, %v1253
        %v1255 = vand.u32 %v1254, 4294901760
        %1256 = vmatpush1.msra.mxu0 %v1255
        %v1257 = vand.u32 %v246, 4294901760
        %v1258 = vsub.f32 %v246, %v1257
        %v1259 = vand.u32 %v1258, 4294901760
        %1260 = vmatprep.subr.mxu0 %v1259
        %v1261 = vand.u32 %v245, 4294901760
        %v1262 = vsub.f32 %v245, %v1261
        %v1263 = vand.u32 %v1262, 4294901760
        %1264 = vmatpush1.msra.mxu0 %v1263
        %v1265 = vand.u32 %v244, 4294901760
        %v1266 = vsub.f32 %v244, %v1265
        %v1267 = vand.u32 %v1266, 4294901760
        %1268 = vmatprep.subr.mxu0 %v1267
        %v1269 = vand.u32 %v243, 4294901760
        %v1270 = vsub.f32 %v243, %v1269
        %v1271 = vand.u32 %v1270, 4294901760
        %1272 = vmatpush1.msra.mxu0 %v1271
        %v1273 = vand.u32 %v242, 4294901760
        %v1274 = vsub.f32 %v242, %v1273
        %v1275 = vand.u32 %v1274, 4294901760
        %1276 = vmatprep.subr.mxu0 %v1275
        %v1277 = vand.u32 %v241, 4294901760
        %v1278 = vsub.f32 %v241, %v1277
        %v1279 = vand.u32 %v1278, 4294901760
        %1280 = vmatpush1.msra.mxu0 %v1279
        %v1281 = vand.u32 %v240, 4294901760
        %v1282 = vsub.f32 %v240, %v1281
        %v1283 = vand.u32 %v1282, 4294901760
        %1284 = vmatprep.subr.mxu0 %v1283
        %v1285 = vand.u32 %v239, 4294901760
        %v1286 = vsub.f32 %v239, %v1285
        %v1287 = vand.u32 %v1286, 4294901760
        %1288 = vmatpush1.msra.mxu0 %v1287
        %v1289 = vand.u32 %v238, 4294901760
        %v1290 = vsub.f32 %v238, %v1289
        %v1291 = vand.u32 %v1290, 4294901760
        %1292 = vmatprep.subr.mxu0 %v1291
        %v1293 = vand.u32 %v237, 4294901760
        %v1294 = vsub.f32 %v237, %v1293
        %v1295 = vand.u32 %v1294, 4294901760
        %1296 = vmatpush1.msra.mxu0 %v1295
        %v1297 = vand.u32 %v236, 4294901760
        %v1298 = vsub.f32 %v236, %v1297
        %v1299 = vand.u32 %v1298, 4294901760
        %1300 = vmatprep.subr.mxu0 %v1299
        %v1301 = vand.u32 %v235, 4294901760
        %v1302 = vsub.f32 %v235, %v1301
        %v1303 = vand.u32 %v1302, 4294901760
        %1304 = vmatpush1.msra.mxu0 %v1303
        %v1305 = vand.u32 %v234, 4294901760
        %v1306 = vsub.f32 %v234, %v1305
        %v1307 = vand.u32 %v1306, 4294901760
        %1308 = vmatprep.subr.mxu0 %v1307
        %v1309 = vand.u32 %v233, 4294901760
        %v1310 = vsub.f32 %v233, %v1309
        %v1311 = vand.u32 %v1310, 4294901760
        %1312 = vmatpush1.msra.mxu0 %v1311
        %v1313 = vand.u32 %v232, 4294901760
        %v1314 = vsub.f32 %v232, %v1313
        %v1315 = vand.u32 %v1314, 4294901760
        %1316 = vmatprep.subr.mxu0 %v1315
        %v1317 = vand.u32 %v231, 4294901760
        %v1318 = vsub.f32 %v231, %v1317
        %v1319 = vand.u32 %v1318, 4294901760
        %1320 = vmatpush1.msra.mxu0 %v1319
        %v1321 = vand.u32 %v230, 4294901760
        %v1322 = vsub.f32 %v230, %v1321
        %v1323 = vand.u32 %v1322, 4294901760
        %1324 = vmatprep.subr.mxu0 %v1323
        %v1325 = vand.u32 %v229, 4294901760
        %v1326 = vsub.f32 %v229, %v1325
        %v1327 = vand.u32 %v1326, 4294901760
        %1328 = vmatpush1.msra.mxu0 %v1327
        %v1329 = vand.u32 %v228, 4294901760
        %v1330 = vsub.f32 %v228, %v1329
        %v1331 = vand.u32 %v1330, 4294901760
        %1332 = vmatprep.subr.mxu0 %v1331
        %v1333 = vand.u32 %v227, 4294901760
        %v1334 = vsub.f32 %v227, %v1333
        %v1335 = vand.u32 %v1334, 4294901760
        %1336 = vmatpush1.msra.mxu0 %v1335
        %v1337 = vand.u32 %v226, 4294901760
        %v1338 = vsub.f32 %v226, %v1337
        %v1339 = vand.u32 %v1338, 4294901760
        %1340 = vmatprep.subr.mxu0 %v1339
        %v1341 = vand.u32 %v225, 4294901760
        %v1342 = vsub.f32 %v225, %v1341
        %v1343 = vand.u32 %v1342, 4294901760
        %1344 = vmatpush1.msra.mxu0 %v1343
        %v1345 = vand.u32 %v288, 4294901760
        %v1346 = vsub.f32 %v288, %v1345
        %v1347 = vand.u32 %v1346, 4294901760
        %1348 = vmatprep.subr.mxu0 %v1347
        %v1349 = vand.u32 %v287, 4294901760
        %v1350 = vsub.f32 %v287, %v1349
        %v1351 = vand.u32 %v1350, 4294901760
        %1352 = vmatpush2.msra.mxu0 %v1351
        %v1353 = vand.u32 %v286, 4294901760
        %v1354 = vsub.f32 %v286, %v1353
        %v1355 = vand.u32 %v1354, 4294901760
        %1356 = vmatprep.subr.mxu0 %v1355
        %v1357 = vand.u32 %v285, 4294901760
        %v1358 = vsub.f32 %v285, %v1357
        %v1359 = vand.u32 %v1358, 4294901760
        %1360 = vmatpush2.msra.mxu0 %v1359
        %v1361 = vand.u32 %v284, 4294901760
        %v1362 = vsub.f32 %v284, %v1361
        %v1363 = vand.u32 %v1362, 4294901760
        %1364 = vmatprep.subr.mxu0 %v1363
        %v1365 = vand.u32 %v283, 4294901760
        %v1366 = vsub.f32 %v283, %v1365
        %v1367 = vand.u32 %v1366, 4294901760
        %1368 = vmatpush2.msra.mxu0 %v1367
        %v1369 = vand.u32 %v282, 4294901760
        %v1370 = vsub.f32 %v282, %v1369
        %v1371 = vand.u32 %v1370, 4294901760
        %1372 = vmatprep.subr.mxu0 %v1371
        %v1373 = vand.u32 %v281, 4294901760
        %v1374 = vsub.f32 %v281, %v1373
        %v1375 = vand.u32 %v1374, 4294901760
        %1376 = vmatpush2.msra.mxu0 %v1375
        %v1377 = vand.u32 %v280, 4294901760
        %v1378 = vsub.f32 %v280, %v1377
        %v1379 = vand.u32 %v1378, 4294901760
        %1380 = vmatprep.subr.mxu0 %v1379
        %v1381 = vand.u32 %v279, 4294901760
        %v1382 = vsub.f32 %v279, %v1381
        %v1383 = vand.u32 %v1382, 4294901760
        %1384 = vmatpush2.msra.mxu0 %v1383
        %v1385 = vand.u32 %v278, 4294901760
        %v1386 = vsub.f32 %v278, %v1385
        %v1387 = vand.u32 %v1386, 4294901760
        %1388 = vmatprep.subr.mxu0 %v1387
        %v1389 = vand.u32 %v277, 4294901760
        %v1390 = vsub.f32 %v277, %v1389
        %v1391 = vand.u32 %v1390, 4294901760
        %1392 = vmatpush2.msra.mxu0 %v1391
        %v1393 = vand.u32 %v276, 4294901760
        %v1394 = vsub.f32 %v276, %v1393
        %v1395 = vand.u32 %v1394, 4294901760
        %1396 = vmatprep.subr.mxu0 %v1395
        %v1397 = vand.u32 %v275, 4294901760
        %v1398 = vsub.f32 %v275, %v1397
        %v1399 = vand.u32 %v1398, 4294901760
        %1400 = vmatpush2.msra.mxu0 %v1399
        %v1401 = vand.u32 %v274, 4294901760
        %v1402 = vsub.f32 %v274, %v1401
        %v1403 = vand.u32 %v1402, 4294901760
        %1404 = vmatprep.subr.mxu0 %v1403
        %v1405 = vand.u32 %v273, 4294901760
        %v1406 = vsub.f32 %v273, %v1405
        %v1407 = vand.u32 %v1406, 4294901760
        %1408 = vmatpush2.msra.mxu0 %v1407
        %v1409 = vand.u32 %v272, 4294901760
        %v1410 = vsub.f32 %v272, %v1409
        %v1411 = vand.u32 %v1410, 4294901760
        %1412 = vmatprep.subr.mxu0 %v1411
        %v1413 = vand.u32 %v271, 4294901760
        %v1414 = vsub.f32 %v271, %v1413
        %v1415 = vand.u32 %v1414, 4294901760
        %1416 = vmatpush2.msra.mxu0 %v1415
        %v1417 = vand.u32 %v270, 4294901760
        %v1418 = vsub.f32 %v270, %v1417
        %v1419 = vand.u32 %v1418, 4294901760
        %1420 = vmatprep.subr.mxu0 %v1419
        %v1421 = vand.u32 %v269, 4294901760
        %v1422 = vsub.f32 %v269, %v1421
        %v1423 = vand.u32 %v1422, 4294901760
        %1424 = vmatpush2.msra.mxu0 %v1423
        %v1425 = vand.u32 %v268, 4294901760
        %v1426 = vsub.f32 %v268, %v1425
        %v1427 = vand.u32 %v1426, 4294901760
        %1428 = vmatprep.subr.mxu0 %v1427
        %v1429 = vand.u32 %v267, 4294901760
        %v1430 = vsub.f32 %v267, %v1429
        %v1431 = vand.u32 %v1430, 4294901760
        %1432 = vmatpush2.msra.mxu0 %v1431
        %v1433 = vand.u32 %v266, 4294901760
        %v1434 = vsub.f32 %v266, %v1433
        %v1435 = vand.u32 %v1434, 4294901760
        %1436 = vmatprep.subr.mxu0 %v1435
        %v1437 = vand.u32 %v265, 4294901760
        %v1438 = vsub.f32 %v265, %v1437
        %v1439 = vand.u32 %v1438, 4294901760
        %1440 = vmatpush2.msra.mxu0 %v1439
        %v1441 = vand.u32 %v264, 4294901760
        %v1442 = vsub.f32 %v264, %v1441
        %v1443 = vand.u32 %v1442, 4294901760
        %1444 = vmatprep.subr.mxu0 %v1443
        %v1445 = vand.u32 %v263, 4294901760
        %v1446 = vsub.f32 %v263, %v1445
        %v1447 = vand.u32 %v1446, 4294901760
        %1448 = vmatpush2.msra.mxu0 %v1447
        %v1449 = vand.u32 %v262, 4294901760
        %v1450 = vsub.f32 %v262, %v1449
        %v1451 = vand.u32 %v1450, 4294901760
        %1452 = vmatprep.subr.mxu0 %v1451
        %v1453 = vand.u32 %v261, 4294901760
        %v1454 = vsub.f32 %v261, %v1453
        %v1455 = vand.u32 %v1454, 4294901760
        %1456 = vmatpush2.msra.mxu0 %v1455
        %v1457 = vand.u32 %v260, 4294901760
        %v1458 = vsub.f32 %v260, %v1457
        %v1459 = vand.u32 %v1458, 4294901760
        %1460 = vmatprep.subr.mxu0 %v1459
        %v1461 = vand.u32 %v259, 4294901760
        %v1462 = vsub.f32 %v259, %v1461
        %v1463 = vand.u32 %v1462, 4294901760
        %1464 = vmatpush2.msra.mxu0 %v1463
        %v1465 = vand.u32 %v258, 4294901760
        %v1466 = vsub.f32 %v258, %v1465
        %v1467 = vand.u32 %v1466, 4294901760
        %1468 = vmatprep.subr.mxu0 %v1467
        %v1469 = vand.u32 %v257, 4294901760
        %v1470 = vsub.f32 %v257, %v1469
        %v1471 = vand.u32 %v1470, 4294901760
        %1472 = vmatpush2.msra.mxu0 %v1471
        %v1473 = vand.u32 %v222, 4294901760
        %1474 = vmatprep.mubr.f32.mxu0 %v1473
        %v1475 = vand.u32 %v221, 4294901760
        %1476 = vmatmul.mubr.f32.gmra.mxu0 %v1475
        %v1477 = vpop.f32.mrf.mxu0
        %v1478 = vadd.f32 %v1201, %v1477
        %v1479 = vpop.f32.mrf.mxu0
        %v1480 = vadd.f32 %v1203, %v1479
        %v1481 = vand.u32 %v224, 4294901760
        %1482 = vmatprep.mubr.f32.mxu0 %v1481
        %v1483 = vand.u32 %v223, 4294901760
        %1484 = vmatmul.mubr.f32.gmra.mxu0 %v1483
        %v1485 = vpop.f32.mrf.mxu0
        %v1486 = vadd.f32 %v1213, %v1485
        %v1487 = vpop.f32.mrf.mxu0
        %v1488 = vadd.f32 %v1215, %v1487
        %1489 = vdwg.mxu0
        %v1490 = vand.u32 %v256, 4294901760
        %1491 = vmatprep.subr.mxu0 %v1490
        %v1492 = vand.u32 %v255, 4294901760
        %1493 = vmatpush1.msra.mxu0 %v1492
        %v1494 = vand.u32 %v254, 4294901760
        %1495 = vmatprep.subr.mxu0 %v1494
        %v1496 = vand.u32 %v253, 4294901760
        %1497 = vmatpush1.msra.mxu0 %v1496
        %v1498 = vand.u32 %v252, 4294901760
        %1499 = vmatprep.subr.mxu0 %v1498
        %v1500 = vand.u32 %v251, 4294901760
        %1501 = vmatpush1.msra.mxu0 %v1500
        %v1502 = vand.u32 %v250, 4294901760
        %1503 = vmatprep.subr.mxu0 %v1502
        %v1504 = vand.u32 %v249, 4294901760
        %1505 = vmatpush1.msra.mxu0 %v1504
        %v1506 = vand.u32 %v248, 4294901760
        %1507 = vmatprep.subr.mxu0 %v1506
        %v1508 = vand.u32 %v247, 4294901760
        %1509 = vmatpush1.msra.mxu0 %v1508
        %v1510 = vand.u32 %v246, 4294901760
        %1511 = vmatprep.subr.mxu0 %v1510
        %v1512 = vand.u32 %v245, 4294901760
        %1513 = vmatpush1.msra.mxu0 %v1512
        %v1514 = vand.u32 %v244, 4294901760
        %1515 = vmatprep.subr.mxu0 %v1514
        %v1516 = vand.u32 %v243, 4294901760
        %1517 = vmatpush1.msra.mxu0 %v1516
        %v1518 = vand.u32 %v242, 4294901760
        %1519 = vmatprep.subr.mxu0 %v1518
        %v1520 = vand.u32 %v241, 4294901760
        %1521 = vmatpush1.msra.mxu0 %v1520
        %v1522 = vand.u32 %v240, 4294901760
        %1523 = vmatprep.subr.mxu0 %v1522
        %v1524 = vand.u32 %v239, 4294901760
        %1525 = vmatpush1.msra.mxu0 %v1524
        %v1526 = vand.u32 %v238, 4294901760
        %1527 = vmatprep.subr.mxu0 %v1526
        %v1528 = vand.u32 %v237, 4294901760
        %1529 = vmatpush1.msra.mxu0 %v1528
        %v1530 = vand.u32 %v236, 4294901760
        %1531 = vmatprep.subr.mxu0 %v1530
        %v1532 = vand.u32 %v235, 4294901760
        %1533 = vmatpush1.msra.mxu0 %v1532
        %v1534 = vand.u32 %v234, 4294901760
        %1535 = vmatprep.subr.mxu0 %v1534
        %v1536 = vand.u32 %v233, 4294901760
        %1537 = vmatpush1.msra.mxu0 %v1536
        %v1538 = vand.u32 %v232, 4294901760
        %1539 = vmatprep.subr.mxu0 %v1538
        %v1540 = vand.u32 %v231, 4294901760
        %1541 = vmatpush1.msra.mxu0 %v1540
        %v1542 = vand.u32 %v230, 4294901760
        %1543 = vmatprep.subr.mxu0 %v1542
        %v1544 = vand.u32 %v229, 4294901760
        %1545 = vmatpush1.msra.mxu0 %v1544
        %v1546 = vand.u32 %v228, 4294901760
        %1547 = vmatprep.subr.mxu0 %v1546
        %v1548 = vand.u32 %v227, 4294901760
        %1549 = vmatpush1.msra.mxu0 %v1548
        %v1550 = vand.u32 %v226, 4294901760
        %1551 = vmatprep.subr.mxu0 %v1550
        %v1552 = vand.u32 %v225, 4294901760
        %1553 = vmatpush1.msra.mxu0 %v1552
        %v1554 = vand.u32 %v288, 4294901760
        %1555 = vmatprep.subr.mxu0 %v1554
        %v1556 = vand.u32 %v287, 4294901760
        %1557 = vmatpush2.msra.mxu0 %v1556
        %v1558 = vand.u32 %v286, 4294901760
        %1559 = vmatprep.subr.mxu0 %v1558
        %v1560 = vand.u32 %v285, 4294901760
        %1561 = vmatpush2.msra.mxu0 %v1560
        %v1562 = vand.u32 %v284, 4294901760
        %1563 = vmatprep.subr.mxu0 %v1562
        %v1564 = vand.u32 %v283, 4294901760
        %1565 = vmatpush2.msra.mxu0 %v1564
        %v1566 = vand.u32 %v282, 4294901760
        %1567 = vmatprep.subr.mxu0 %v1566
        %v1568 = vand.u32 %v281, 4294901760
        %1569 = vmatpush2.msra.mxu0 %v1568
        %v1570 = vand.u32 %v280, 4294901760
        %1571 = vmatprep.subr.mxu0 %v1570
        %v1572 = vand.u32 %v279, 4294901760
        %1573 = vmatpush2.msra.mxu0 %v1572
        %v1574 = vand.u32 %v278, 4294901760
        %1575 = vmatprep.subr.mxu0 %v1574
        %v1576 = vand.u32 %v277, 4294901760
        %1577 = vmatpush2.msra.mxu0 %v1576
        %v1578 = vand.u32 %v276, 4294901760
        %1579 = vmatprep.subr.mxu0 %v1578
        %v1580 = vand.u32 %v275, 4294901760
        %1581 = vmatpush2.msra.mxu0 %v1580
        %v1582 = vand.u32 %v274, 4294901760
        %1583 = vmatprep.subr.mxu0 %v1582
        %v1584 = vand.u32 %v273, 4294901760
        %1585 = vmatpush2.msra.mxu0 %v1584
        %v1586 = vand.u32 %v272, 4294901760
        %1587 = vmatprep.subr.mxu0 %v1586
        %v1588 = vand.u32 %v271, 4294901760
        %1589 = vmatpush2.msra.mxu0 %v1588
        %v1590 = vand.u32 %v270, 4294901760
        %1591 = vmatprep.subr.mxu0 %v1590
        %v1592 = vand.u32 %v269, 4294901760
        %1593 = vmatpush2.msra.mxu0 %v1592
        %v1594 = vand.u32 %v268, 4294901760
        %1595 = vmatprep.subr.mxu0 %v1594
        %v1596 = vand.u32 %v267, 4294901760
        %1597 = vmatpush2.msra.mxu0 %v1596
        %v1598 = vand.u32 %v266, 4294901760
        %1599 = vmatprep.subr.mxu0 %v1598
        %v1600 = vand.u32 %v265, 4294901760
        %1601 = vmatpush2.msra.mxu0 %v1600
        %v1602 = vand.u32 %v264, 4294901760
        %1603 = vmatprep.subr.mxu0 %v1602
        %v1604 = vand.u32 %v263, 4294901760
        %1605 = vmatpush2.msra.mxu0 %v1604
        %v1606 = vand.u32 %v262, 4294901760
        %1607 = vmatprep.subr.mxu0 %v1606
        %v1608 = vand.u32 %v261, 4294901760
        %1609 = vmatpush2.msra.mxu0 %v1608
        %v1610 = vand.u32 %v260, 4294901760
        %1611 = vmatprep.subr.mxu0 %v1610
        %v1612 = vand.u32 %v259, 4294901760
        %1613 = vmatpush2.msra.mxu0 %v1612
        %v1614 = vand.u32 %v258, 4294901760
        %1615 = vmatprep.subr.mxu0 %v1614
        %v1616 = vand.u32 %v257, 4294901760
        %1617 = vmatpush2.msra.mxu0 %v1616
        %v1618 = vand.u32 %v222, 4294901760
        %1619 = vmatprep.mubr.f32.mxu0 %v1618
        %v1620 = vand.u32 %v221, 4294901760
        %1621 = vmatmul.mubr.f32.gmra.mxu0 %v1620
        %v1622 = vpop.f32.mrf.mxu0
        %v1623 = vadd.f32 %v1478, %v1622
        %v1624 = vpop.f32.mrf.mxu0
        %v1625 = vadd.f32 %v1480, %v1624
        %v1626 = vand.u32 %v224, 4294901760
        %1627 = vmatprep.mubr.f32.mxu0 %v1626
        %v1628 = vand.u32 %v223, 4294901760
        %1629 = vmatmul.mubr.f32.gmra.mxu0 %v1628
        %v1630 = vpop.f32.mrf.mxu0
        %v1631 = vadd.f32 %v1486, %v1630
        %v1632 = vpop.f32.mrf.mxu0
        %v1633 = vadd.f32 %v1488, %v1632
        %1634 = vdwg.mxu0
        %v1635 = vld [vmem:[#allocation7] sm:$0xff]
        %v1636 = vld [vmem:[#allocation7 + $0x8] sm:$0xff]
        %vm1637 = vcmask 130048
        %v1639 = vsel %vm1637, %v1635, 0
        %v1642 = vsel %vm1637, %v1636, 0
        %1644 = vmatprep.subr.mxu0 0.0
        %1645 = vmatpush1.msra.mxu0 0.0
        %1646 = vmatprep.subr.mxu0 0.0
        %1647 = vmatpush1.msra.mxu0 0.0
        %1648 = vmatprep.subr.mxu0 0.0
        %1649 = vmatpush1.msra.mxu0 0.0
        %1650 = vmatprep.subr.mxu0 0.0
        %1651 = vmatpush1.msra.mxu0 0.0
        %1652 = vmatprep.subr.mxu0 0.0
        %1653 = vmatpush1.msra.mxu0 0.0
        %1654 = vmatprep.subr.mxu0 0.0
        %1655 = vmatpush1.msra.mxu0 0.0
        %1656 = vmatprep.subr.mxu0 0.0
        %1657 = vmatpush1.msra.mxu0 0.0
        %1658 = vmatprep.subr.mxu0 0.0
        %1659 = vmatpush1.msra.mxu0 0.0
        %1660 = vmatprep.subr.mxu0 0.0
        %1661 = vmatpush1.msra.mxu0 0.0
        %1662 = vmatprep.subr.mxu0 0.0
        %1663 = vmatpush1.msra.mxu0 0.0
        %1664 = vmatprep.subr.mxu0 0.0
        %1665 = vmatpush1.msra.mxu0 0.0
        %1666 = vmatprep.subr.mxu0 0.0
        %1667 = vmatpush1.msra.mxu0 0.0
        %1668 = vmatprep.subr.mxu0 0.0
        %1669 = vmatpush1.msra.mxu0 0.0
        %1670 = vmatprep.subr.mxu0 0.0
        %1671 = vmatpush1.msra.mxu0 0.0
        %v1672 = vand.u32 %v1633, 4294901760
        %1673 = vmatprep.subr.mxu0 %v1672
        %v1674 = vand.u32 %v1631, 4294901760
        %1675 = vmatpush1.msra.mxu0 %v1674
        %v1676 = vand.u32 %v1625, 4294901760
        %1677 = vmatprep.subr.mxu0 %v1676
        %v1678 = vand.u32 %v1623, 4294901760
        %1679 = vmatpush1.msra.mxu0 %v1678
        %1680 = vmatprep.subr.mxu0 0.0
        %1681 = vmatpush2.msra.mxu0 0.0
        %1682 = vmatprep.subr.mxu0 0.0
        %1683 = vmatpush2.msra.mxu0 0.0
        %1684 = vmatprep.subr.mxu0 0.0
        %1685 = vmatpush2.msra.mxu0 0.0
        %1686 = vmatprep.subr.mxu0 0.0
        %1687 = vmatpush2.msra.mxu0 0.0
        %1688 = vmatprep.subr.mxu0 0.0
        %1689 = vmatpush2.msra.mxu0 0.0
        %1690 = vmatprep.subr.mxu0 0.0
        %1691 = vmatpush2.msra.mxu0 0.0
        %1692 = vmatprep.subr.mxu0 0.0
        %1693 = vmatpush2.msra.mxu0 0.0
        %1694 = vmatprep.subr.mxu0 0.0
        %1695 = vmatpush2.msra.mxu0 0.0
        %1696 = vmatprep.subr.mxu0 0.0
        %1697 = vmatpush2.msra.mxu0 0.0
        %1698 = vmatprep.subr.mxu0 0.0
        %1699 = vmatpush2.msra.mxu0 0.0
        %1700 = vmatprep.subr.mxu0 0.0
        %1701 = vmatpush2.msra.mxu0 0.0
        %1702 = vmatprep.subr.mxu0 0.0
        %1703 = vmatpush2.msra.mxu0 0.0
        %1704 = vmatprep.subr.mxu0 0.0
        %1705 = vmatpush2.msra.mxu0 0.0
        %1706 = vmatprep.subr.mxu0 0.0
        %1707 = vmatpush2.msra.mxu0 0.0
        %1708 = vmatprep.subr.mxu0 0.0
        %1709 = vmatpush2.msra.mxu0 0.0
        %1710 = vmatprep.subr.mxu0 0.0
        %1711 = vmatpush2.msra.mxu0 0.0
        %1712 = vmatprep.mubr.f32.mxu0 0.0
        %v1713 = vand.u32 %v1639, 4294901760
        %v1714 = vsub.f32 %v1639, %v1713
        %v1715 = vand.u32 %v1714, 4294901760
        %v1716 = vsub.f32 %v1714, %v1715
        %v1717 = vand.u32 %v1716, 4294901760
        %1718 = vmatmul.mubr.f32.gmra.mxu0 %v1717
        %v1719 = vpop.f32.mrf.mxu0
        %v1720 = vadd.f32 0.0, %v1719
        %v1721 = vpop.f32.mrf.mxu0
        %v1722 = vadd.f32 0.0, %v1721
        %1723 = vmatprep.mubr.f32.mxu0 0.0
        %v1724 = vand.u32 %v1642, 4294901760
        %v1725 = vsub.f32 %v1642, %v1724
        %v1726 = vand.u32 %v1725, 4294901760
        %v1727 = vsub.f32 %v1725, %v1726
        %v1728 = vand.u32 %v1727, 4294901760
        %1729 = vmatmul.mubr.f32.gmra.mxu0 %v1728
        %v1730 = vpop.f32.mrf.mxu0
        %v1731 = vadd.f32 0.0, %v1730
        %v1732 = vpop.f32.mrf.mxu0
        %v1733 = vadd.f32 0.0, %v1732
        %1734 = vdwg.mxu0
        %1735 = vmatprep.subr.mxu0 0.0
        %1736 = vmatpush1.msra.mxu0 0.0
        %1737 = vmatprep.subr.mxu0 0.0
        %1738 = vmatpush1.msra.mxu0 0.0
        %1739 = vmatprep.subr.mxu0 0.0
        %1740 = vmatpush1.msra.mxu0 0.0
        %1741 = vmatprep.subr.mxu0 0.0
        %1742 = vmatpush1.msra.mxu0 0.0
        %1743 = vmatprep.subr.mxu0 0.0
        %1744 = vmatpush1.msra.mxu0 0.0
        %1745 = vmatprep.subr.mxu0 0.0
        %1746 = vmatpush1.msra.mxu0 0.0
        %1747 = vmatprep.subr.mxu0 0.0
        %1748 = vmatpush1.msra.mxu0 0.0
        %1749 = vmatprep.subr.mxu0 0.0
        %1750 = vmatpush1.msra.mxu0 0.0
        %1751 = vmatprep.subr.mxu0 0.0
        %1752 = vmatpush1.msra.mxu0 0.0
        %1753 = vmatprep.subr.mxu0 0.0
        %1754 = vmatpush1.msra.mxu0 0.0
        %1755 = vmatprep.subr.mxu0 0.0
        %1756 = vmatpush1.msra.mxu0 0.0
        %1757 = vmatprep.subr.mxu0 0.0
        %1758 = vmatpush1.msra.mxu0 0.0
        %1759 = vmatprep.subr.mxu0 0.0
        %1760 = vmatpush1.msra.mxu0 0.0
        %1761 = vmatprep.subr.mxu0 0.0
        %1762 = vmatpush1.msra.mxu0 0.0
        %v1763 = vand.u32 %v1633, 4294901760
        %v1764 = vsub.f32 %v1633, %v1763
        %v1765 = vand.u32 %v1764, 4294901760
        %v1766 = vsub.f32 %v1764, %v1765
        %v1767 = vand.u32 %v1766, 4294901760
        %1768 = vmatprep.subr.mxu0 %v1767
        %v1769 = vand.u32 %v1631, 4294901760
        %v1770 = vsub.f32 %v1631, %v1769
        %v1771 = vand.u32 %v1770, 4294901760
        %v1772 = vsub.f32 %v1770, %v1771
        %v1773 = vand.u32 %v1772, 4294901760
        %1774 = vmatpush1.msra.mxu0 %v1773
        %v1775 = vand.u32 %v1625, 4294901760
        %v1776 = vsub.f32 %v1625, %v1775
        %v1777 = vand.u32 %v1776, 4294901760
        %v1778 = vsub.f32 %v1776, %v1777
        %v1779 = vand.u32 %v1778, 4294901760
        %1780 = vmatprep.subr.mxu0 %v1779
        %v1781 = vand.u32 %v1623, 4294901760
        %v1782 = vsub.f32 %v1623, %v1781
        %v1783 = vand.u32 %v1782, 4294901760
        %v1784 = vsub.f32 %v1782, %v1783
        %v1785 = vand.u32 %v1784, 4294901760
        %1786 = vmatpush1.msra.mxu0 %v1785
        %1787 = vmatprep.subr.mxu0 0.0
        %1788 = vmatpush2.msra.mxu0 0.0
        %1789 = vmatprep.subr.mxu0 0.0
        %1790 = vmatpush2.msra.mxu0 0.0
        %1791 = vmatprep.subr.mxu0 0.0
        %1792 = vmatpush2.msra.mxu0 0.0
        %1793 = vmatprep.subr.mxu0 0.0
        %1794 = vmatpush2.msra.mxu0 0.0
        %1795 = vmatprep.subr.mxu0 0.0
        %1796 = vmatpush2.msra.mxu0 0.0
        %1797 = vmatprep.subr.mxu0 0.0
        %1798 = vmatpush2.msra.mxu0 0.0
        %1799 = vmatprep.subr.mxu0 0.0
        %1800 = vmatpush2.msra.mxu0 0.0
        %1801 = vmatprep.subr.mxu0 0.0
        %1802 = vmatpush2.msra.mxu0 0.0
        %1803 = vmatprep.subr.mxu0 0.0
        %1804 = vmatpush2.msra.mxu0 0.0
        %1805 = vmatprep.subr.mxu0 0.0
        %1806 = vmatpush2.msra.mxu0 0.0
        %1807 = vmatprep.subr.mxu0 0.0
        %1808 = vmatpush2.msra.mxu0 0.0
        %1809 = vmatprep.subr.mxu0 0.0
        %1810 = vmatpush2.msra.mxu0 0.0
        %1811 = vmatprep.subr.mxu0 0.0
        %1812 = vmatpush2.msra.mxu0 0.0
        %1813 = vmatprep.subr.mxu0 0.0
        %1814 = vmatpush2.msra.mxu0 0.0
        %1815 = vmatprep.subr.mxu0 0.0
        %1816 = vmatpush2.msra.mxu0 0.0
        %1817 = vmatprep.subr.mxu0 0.0
        %1818 = vmatpush2.msra.mxu0 0.0
        %1819 = vmatprep.mubr.f32.mxu0 0.0
        %v1820 = vand.u32 %v1639, 4294901760
        %1821 = vmatmul.mubr.f32.gmra.mxu0 %v1820
        %v1822 = vpop.f32.mrf.mxu0
        %v1823 = vadd.f32 %v1720, %v1822
        %v1824 = vpop.f32.mrf.mxu0
        %v1825 = vadd.f32 %v1722, %v1824
        %1826 = vmatprep.mubr.f32.mxu0 0.0
        %v1827 = vand.u32 %v1642, 4294901760
        %1828 = vmatmul.mubr.f32.gmra.mxu0 %v1827
        %v1829 = vpop.f32.mrf.mxu0
        %v1830 = vadd.f32 %v1731, %v1829
        %v1831 = vpop.f32.mrf.mxu0
        %v1832 = vadd.f32 %v1733, %v1831
        %1833 = vdwg.mxu0
        %1834 = vmatprep.subr.mxu0 0.0
        %1835 = vmatpush1.msra.mxu0 0.0
        %1836 = vmatprep.subr.mxu0 0.0
        %1837 = vmatpush1.msra.mxu0 0.0
        %1838 = vmatprep.subr.mxu0 0.0
        %1839 = vmatpush1.msra.mxu0 0.0
        %1840 = vmatprep.subr.mxu0 0.0
        %1841 = vmatpush1.msra.mxu0 0.0
        %1842 = vmatprep.subr.mxu0 0.0
        %1843 = vmatpush1.msra.mxu0 0.0
        %1844 = vmatprep.subr.mxu0 0.0
        %1845 = vmatpush1.msra.mxu0 0.0
        %1846 = vmatprep.subr.mxu0 0.0
        %1847 = vmatpush1.msra.mxu0 0.0
        %1848 = vmatprep.subr.mxu0 0.0
        %1849 = vmatpush1.msra.mxu0 0.0
        %1850 = vmatprep.subr.mxu0 0.0
        %1851 = vmatpush1.msra.mxu0 0.0
        %1852 = vmatprep.subr.mxu0 0.0
        %1853 = vmatpush1.msra.mxu0 0.0
        %1854 = vmatprep.subr.mxu0 0.0
        %1855 = vmatpush1.msra.mxu0 0.0
        %1856 = vmatprep.subr.mxu0 0.0
        %1857 = vmatpush1.msra.mxu0 0.0
        %1858 = vmatprep.subr.mxu0 0.0
        %1859 = vmatpush1.msra.mxu0 0.0
        %1860 = vmatprep.subr.mxu0 0.0
        %1861 = vmatpush1.msra.mxu0 0.0
        %v1862 = vand.u32 %v1633, 4294901760
        %v1863 = vsub.f32 %v1633, %v1862
        %1864 = vmatprep.subr.mxu0 %v1863
        %v1865 = vand.u32 %v1631, 4294901760
        %v1866 = vsub.f32 %v1631, %v1865
        %1867 = vmatpush1.msra.mxu0 %v1866
        %v1868 = vand.u32 %v1625, 4294901760
        %v1869 = vsub.f32 %v1625, %v1868
        %1870 = vmatprep.subr.mxu0 %v1869
        %v1871 = vand.u32 %v1623, 4294901760
        %v1872 = vsub.f32 %v1623, %v1871
        %1873 = vmatpush1.msra.mxu0 %v1872
        %1874 = vmatprep.subr.mxu0 0.0
        %1875 = vmatpush2.msra.mxu0 0.0
        %1876 = vmatprep.subr.mxu0 0.0
        %1877 = vmatpush2.msra.mxu0 0.0
        %1878 = vmatprep.subr.mxu0 0.0
        %1879 = vmatpush2.msra.mxu0 0.0
        %1880 = vmatprep.subr.mxu0 0.0
        %1881 = vmatpush2.msra.mxu0 0.0
        %1882 = vmatprep.subr.mxu0 0.0
        %1883 = vmatpush2.msra.mxu0 0.0
        %1884 = vmatprep.subr.mxu0 0.0
        %1885 = vmatpush2.msra.mxu0 0.0
        %1886 = vmatprep.subr.mxu0 0.0
        %1887 = vmatpush2.msra.mxu0 0.0
        %1888 = vmatprep.subr.mxu0 0.0
        %1889 = vmatpush2.msra.mxu0 0.0
        %1890 = vmatprep.subr.mxu0 0.0
        %1891 = vmatpush2.msra.mxu0 0.0
        %1892 = vmatprep.subr.mxu0 0.0
        %1893 = vmatpush2.msra.mxu0 0.0
        %1894 = vmatprep.subr.mxu0 0.0
        %1895 = vmatpush2.msra.mxu0 0.0
        %1896 = vmatprep.subr.mxu0 0.0
        %1897 = vmatpush2.msra.mxu0 0.0
        %1898 = vmatprep.subr.mxu0 0.0
        %1899 = vmatpush2.msra.mxu0 0.0
        %1900 = vmatprep.subr.mxu0 0.0
        %1901 = vmatpush2.msra.mxu0 0.0
        %1902 = vmatprep.subr.mxu0 0.0
        %1903 = vmatpush2.msra.mxu0 0.0
        %1904 = vmatprep.subr.mxu0 0.0
        %1905 = vmatpush2.msra.mxu0 0.0
        %1906 = vmatprep.mubr.f32.mxu0 0.0
        %v1907 = vand.u32 %v1639, 4294901760
        %v1908 = vsub.f32 %v1639, %v1907
        %1909 = vmatmul.mubr.f32.gmra.mxu0 %v1908
        %v1910 = vpop.f32.mrf.mxu0
        %v1911 = vadd.f32 %v1823, %v1910
        %v1912 = vpop.f32.mrf.mxu0
        %v1913 = vadd.f32 %v1825, %v1912
        %1914 = vmatprep.mubr.f32.mxu0 0.0
        %v1915 = vand.u32 %v1642, 4294901760
        %v1916 = vsub.f32 %v1642, %v1915
        %1917 = vmatmul.mubr.f32.gmra.mxu0 %v1916
        %v1918 = vpop.f32.mrf.mxu0
        %v1919 = vadd.f32 %v1830, %v1918
        %v1920 = vpop.f32.mrf.mxu0
        %v1921 = vadd.f32 %v1832, %v1920
        %1922 = vdwg.mxu0
        %1923 = vmatprep.subr.mxu0 0.0
        %1924 = vmatpush1.msra.mxu0 0.0
        %1925 = vmatprep.subr.mxu0 0.0
        %1926 = vmatpush1.msra.mxu0 0.0
        %1927 = vmatprep.subr.mxu0 0.0
        %1928 = vmatpush1.msra.mxu0 0.0
        %1929 = vmatprep.subr.mxu0 0.0
        %1930 = vmatpush1.msra.mxu0 0.0
        %1931 = vmatprep.subr.mxu0 0.0
        %1932 = vmatpush1.msra.mxu0 0.0
        %1933 = vmatprep.subr.mxu0 0.0
        %1934 = vmatpush1.msra.mxu0 0.0
        %1935 = vmatprep.subr.mxu0 0.0
        %1936 = vmatpush1.msra.mxu0 0.0
        %1937 = vmatprep.subr.mxu0 0.0
        %1938 = vmatpush1.msra.mxu0 0.0
        %1939 = vmatprep.subr.mxu0 0.0
        %1940 = vmatpush1.msra.mxu0 0.0
        %1941 = vmatprep.subr.mxu0 0.0
        %1942 = vmatpush1.msra.mxu0 0.0
        %1943 = vmatprep.subr.mxu0 0.0
        %1944 = vmatpush1.msra.mxu0 0.0
        %1945 = vmatprep.subr.mxu0 0.0
        %1946 = vmatpush1.msra.mxu0 0.0
        %1947 = vmatprep.subr.mxu0 0.0
        %1948 = vmatpush1.msra.mxu0 0.0
        %1949 = vmatprep.subr.mxu0 0.0
        %1950 = vmatpush1.msra.mxu0 0.0
        %v1951 = vand.u32 %v1633, 4294901760
        %1952 = vmatprep.subr.mxu0 %v1951
        %v1953 = vand.u32 %v1631, 4294901760
        %1954 = vmatpush1.msra.mxu0 %v1953
        %v1955 = vand.u32 %v1625, 4294901760
        %1956 = vmatprep.subr.mxu0 %v1955
        %v1957 = vand.u32 %v1623, 4294901760
        %1958 = vmatpush1.msra.mxu0 %v1957
        %1959 = vmatprep.subr.mxu0 0.0
        %1960 = vmatpush2.msra.mxu0 0.0
        %1961 = vmatprep.subr.mxu0 0.0
        %1962 = vmatpush2.msra.mxu0 0.0
        %1963 = vmatprep.subr.mxu0 0.0
        %1964 = vmatpush2.msra.mxu0 0.0
        %1965 = vmatprep.subr.mxu0 0.0
        %1966 = vmatpush2.msra.mxu0 0.0
        %1967 = vmatprep.subr.mxu0 0.0
        %1968 = vmatpush2.msra.mxu0 0.0
        %1969 = vmatprep.subr.mxu0 0.0
        %1970 = vmatpush2.msra.mxu0 0.0
        %1971 = vmatprep.subr.mxu0 0.0
        %1972 = vmatpush2.msra.mxu0 0.0
        %1973 = vmatprep.subr.mxu0 0.0
        %1974 = vmatpush2.msra.mxu0 0.0
        %1975 = vmatprep.subr.mxu0 0.0
        %1976 = vmatpush2.msra.mxu0 0.0
        %1977 = vmatprep.subr.mxu0 0.0
        %1978 = vmatpush2.msra.mxu0 0.0
        %1979 = vmatprep.subr.mxu0 0.0
        %1980 = vmatpush2.msra.mxu0 0.0
        %1981 = vmatprep.subr.mxu0 0.0
        %1982 = vmatpush2.msra.mxu0 0.0
        %1983 = vmatprep.subr.mxu0 0.0
        %1984 = vmatpush2.msra.mxu0 0.0
        %1985 = vmatprep.subr.mxu0 0.0
        %1986 = vmatpush2.msra.mxu0 0.0
        %1987 = vmatprep.subr.mxu0 0.0
        %1988 = vmatpush2.msra.mxu0 0.0
        %1989 = vmatprep.subr.mxu0 0.0
        %1990 = vmatpush2.msra.mxu0 0.0
        %1991 = vmatprep.mubr.f32.mxu0 0.0
        %v1992 = vand.u32 %v1639, 4294901760
        %v1993 = vsub.f32 %v1639, %v1992
        %v1994 = vand.u32 %v1993, 4294901760
        %1995 = vmatmul.mubr.f32.gmra.mxu0 %v1994
        %v1996 = vpop.f32.mrf.mxu0
        %v1997 = vadd.f32 %v1911, %v1996
        %v1998 = vpop.f32.mrf.mxu0
        %v1999 = vadd.f32 %v1913, %v1998
        %2000 = vmatprep.mubr.f32.mxu0 0.0
        %v2001 = vand.u32 %v1642, 4294901760
        %v2002 = vsub.f32 %v1642, %v2001
        %v2003 = vand.u32 %v2002, 4294901760
        %2004 = vmatmul.mubr.f32.gmra.mxu0 %v2003
        %v2005 = vpop.f32.mrf.mxu0
        %v2006 = vadd.f32 %v1919, %v2005
        %v2007 = vpop.f32.mrf.mxu0
        %v2008 = vadd.f32 %v1921, %v2007
        %2009 = vdwg.mxu0
        %2010 = vmatprep.subr.mxu0 0.0
        %2011 = vmatpush1.msra.mxu0 0.0
        %2012 = vmatprep.subr.mxu0 0.0
        %2013 = vmatpush1.msra.mxu0 0.0
        %2014 = vmatprep.subr.mxu0 0.0
        %2015 = vmatpush1.msra.mxu0 0.0
        %2016 = vmatprep.subr.mxu0 0.0
        %2017 = vmatpush1.msra.mxu0 0.0
        %2018 = vmatprep.subr.mxu0 0.0
        %2019 = vmatpush1.msra.mxu0 0.0
        %2020 = vmatprep.subr.mxu0 0.0
        %2021 = vmatpush1.msra.mxu0 0.0
        %2022 = vmatprep.subr.mxu0 0.0
        %2023 = vmatpush1.msra.mxu0 0.0
        %2024 = vmatprep.subr.mxu0 0.0
        %2025 = vmatpush1.msra.mxu0 0.0
        %2026 = vmatprep.subr.mxu0 0.0
        %2027 = vmatpush1.msra.mxu0 0.0
        %2028 = vmatprep.subr.mxu0 0.0
        %2029 = vmatpush1.msra.mxu0 0.0
        %2030 = vmatprep.subr.mxu0 0.0
        %2031 = vmatpush1.msra.mxu0 0.0
        %2032 = vmatprep.subr.mxu0 0.0
        %2033 = vmatpush1.msra.mxu0 0.0
        %2034 = vmatprep.subr.mxu0 0.0
        %2035 = vmatpush1.msra.mxu0 0.0
        %2036 = vmatprep.subr.mxu0 0.0
        %2037 = vmatpush1.msra.mxu0 0.0
        %v2038 = vand.u32 %v1633, 4294901760
        %v2039 = vsub.f32 %v1633, %v2038
        %v2040 = vand.u32 %v2039, 4294901760
        %2041 = vmatprep.subr.mxu0 %v2040
        %v2042 = vand.u32 %v1631, 4294901760
        %v2043 = vsub.f32 %v1631, %v2042
        %v2044 = vand.u32 %v2043, 4294901760
        %2045 = vmatpush1.msra.mxu0 %v2044
        %v2046 = vand.u32 %v1625, 4294901760
        %v2047 = vsub.f32 %v1625, %v2046
        %v2048 = vand.u32 %v2047, 4294901760
        %2049 = vmatprep.subr.mxu0 %v2048
        %v2050 = vand.u32 %v1623, 4294901760
        %v2051 = vsub.f32 %v1623, %v2050
        %v2052 = vand.u32 %v2051, 4294901760
        %2053 = vmatpush1.msra.mxu0 %v2052
        %2054 = vmatprep.subr.mxu0 0.0
        %2055 = vmatpush2.msra.mxu0 0.0
        %2056 = vmatprep.subr.mxu0 0.0
        %2057 = vmatpush2.msra.mxu0 0.0
        %2058 = vmatprep.subr.mxu0 0.0
        %2059 = vmatpush2.msra.mxu0 0.0
        %2060 = vmatprep.subr.mxu0 0.0
        %2061 = vmatpush2.msra.mxu0 0.0
        %2062 = vmatprep.subr.mxu0 0.0
        %2063 = vmatpush2.msra.mxu0 0.0
        %2064 = vmatprep.subr.mxu0 0.0
        %2065 = vmatpush2.msra.mxu0 0.0
        %2066 = vmatprep.subr.mxu0 0.0
        %2067 = vmatpush2.msra.mxu0 0.0
        %2068 = vmatprep.subr.mxu0 0.0
        %2069 = vmatpush2.msra.mxu0 0.0
        %2070 = vmatprep.subr.mxu0 0.0
        %2071 = vmatpush2.msra.mxu0 0.0
        %2072 = vmatprep.subr.mxu0 0.0
        %2073 = vmatpush2.msra.mxu0 0.0
        %2074 = vmatprep.subr.mxu0 0.0
        %2075 = vmatpush2.msra.mxu0 0.0
        %2076 = vmatprep.subr.mxu0 0.0
        %2077 = vmatpush2.msra.mxu0 0.0
        %2078 = vmatprep.subr.mxu0 0.0
        %2079 = vmatpush2.msra.mxu0 0.0
        %2080 = vmatprep.subr.mxu0 0.0
        %2081 = vmatpush2.msra.mxu0 0.0
        %2082 = vmatprep.subr.mxu0 0.0
        %2083 = vmatpush2.msra.mxu0 0.0
        %2084 = vmatprep.subr.mxu0 0.0
        %2085 = vmatpush2.msra.mxu0 0.0
        %2086 = vmatprep.mubr.f32.mxu0 0.0
        %v2087 = vand.u32 %v1639, 4294901760
        %2088 = vmatmul.mubr.f32.gmra.mxu0 %v2087
        %v2089 = vpop.f32.mrf.mxu0
        %v2090 = vadd.f32 %v1997, %v2089
        %v2091 = vpop.f32.mrf.mxu0
        %v2092 = vadd.f32 %v1999, %v2091
        %2093 = vmatprep.mubr.f32.mxu0 0.0
        %v2094 = vand.u32 %v1642, 4294901760
        %2095 = vmatmul.mubr.f32.gmra.mxu0 %v2094
        %v2096 = vpop.f32.mrf.mxu0
        %v2097 = vadd.f32 %v2006, %v2096
        %v2098 = vpop.f32.mrf.mxu0
        %v2099 = vadd.f32 %v2008, %v2098
        %2100 = vdwg.mxu0
        %2101 = vmatprep.subr.mxu0 0.0
        %2102 = vmatpush1.msra.mxu0 0.0
        %2103 = vmatprep.subr.mxu0 0.0
        %2104 = vmatpush1.msra.mxu0 0.0
        %2105 = vmatprep.subr.mxu0 0.0
        %2106 = vmatpush1.msra.mxu0 0.0
        %2107 = vmatprep.subr.mxu0 0.0
        %2108 = vmatpush1.msra.mxu0 0.0
        %2109 = vmatprep.subr.mxu0 0.0
        %2110 = vmatpush1.msra.mxu0 0.0
        %2111 = vmatprep.subr.mxu0 0.0
        %2112 = vmatpush1.msra.mxu0 0.0
        %2113 = vmatprep.subr.mxu0 0.0
        %2114 = vmatpush1.msra.mxu0 0.0
        %2115 = vmatprep.subr.mxu0 0.0
        %2116 = vmatpush1.msra.mxu0 0.0
        %2117 = vmatprep.subr.mxu0 0.0
        %2118 = vmatpush1.msra.mxu0 0.0
        %2119 = vmatprep.subr.mxu0 0.0
        %2120 = vmatpush1.msra.mxu0 0.0
        %2121 = vmatprep.subr.mxu0 0.0
        %2122 = vmatpush1.msra.mxu0 0.0
        %2123 = vmatprep.subr.mxu0 0.0
        %2124 = vmatpush1.msra.mxu0 0.0
        %2125 = vmatprep.subr.mxu0 0.0
        %2126 = vmatpush1.msra.mxu0 0.0
        %2127 = vmatprep.subr.mxu0 0.0
        %2128 = vmatpush1.msra.mxu0 0.0
        %v2129 = vand.u32 %v1633, 4294901760
        %2130 = vmatprep.subr.mxu0 %v2129
        %v2131 = vand.u32 %v1631, 4294901760
        %2132 = vmatpush1.msra.mxu0 %v2131
        %v2133 = vand.u32 %v1625, 4294901760
        %2134 = vmatprep.subr.mxu0 %v2133
        %v2135 = vand.u32 %v1623, 4294901760
        %2136 = vmatpush1.msra.mxu0 %v2135
        %2137 = vmatprep.subr.mxu0 0.0
        %2138 = vmatpush2.msra.mxu0 0.0
        %2139 = vmatprep.subr.mxu0 0.0
        %2140 = vmatpush2.msra.mxu0 0.0
        %2141 = vmatprep.subr.mxu0 0.0
        %2142 = vmatpush2.msra.mxu0 0.0
        %2143 = vmatprep.subr.mxu0 0.0
        %2144 = vmatpush2.msra.mxu0 0.0
        %2145 = vmatprep.subr.mxu0 0.0
        %2146 = vmatpush2.msra.mxu0 0.0
        %2147 = vmatprep.subr.mxu0 0.0
        %2148 = vmatpush2.msra.mxu0 0.0
        %2149 = vmatprep.subr.mxu0 0.0
        %2150 = vmatpush2.msra.mxu0 0.0
        %2151 = vmatprep.subr.mxu0 0.0
        %2152 = vmatpush2.msra.mxu0 0.0
        %2153 = vmatprep.subr.mxu0 0.0
        %2154 = vmatpush2.msra.mxu0 0.0
        %2155 = vmatprep.subr.mxu0 0.0
        %2156 = vmatpush2.msra.mxu0 0.0
        %2157 = vmatprep.subr.mxu0 0.0
        %2158 = vmatpush2.msra.mxu0 0.0
        %2159 = vmatprep.subr.mxu0 0.0
        %2160 = vmatpush2.msra.mxu0 0.0
        %2161 = vmatprep.subr.mxu0 0.0
        %2162 = vmatpush2.msra.mxu0 0.0
        %2163 = vmatprep.subr.mxu0 0.0
        %2164 = vmatpush2.msra.mxu0 0.0
        %2165 = vmatprep.subr.mxu0 0.0
        %2166 = vmatpush2.msra.mxu0 0.0
        %2167 = vmatprep.subr.mxu0 0.0
        %2168 = vmatpush2.msra.mxu0 0.0
        %2169 = vmatprep.mubr.f32.mxu0 0.0
        %v2170 = vand.u32 %v1639, 4294901760
        %2171 = vmatmul.mubr.f32.gmra.mxu0 %v2170
        %v2172 = vpop.f32.mrf.mxu0
        %v2173 = vadd.f32 %v2090, %v2172
        %v2174 = vpop.f32.mrf.mxu0
        %v2175 = vadd.f32 %v2092, %v2174
        %2176 = vmatprep.mubr.f32.mxu0 0.0
        %v2177 = vand.u32 %v1642, 4294901760
        %2178 = vmatmul.mubr.f32.gmra.mxu0 %v2177
        %v2179 = vpop.f32.mrf.mxu0
        %v2180 = vadd.f32 %v2097, %v2179
        %v2181 = vpop.f32.mrf.mxu0
        %v2182 = vadd.f32 %v2099, %v2181
        %2183 = vdwg.mxu0
        %2184 = vst [vmem:[%s218] sm:$0xff] %v2173
        %2185 = vst [vmem:[%s218 + $0x8] sm:$0xff] %v2175
        %2186 = vst [vmem:[%s218 + $0x10] sm:$0xff] %v2180
        %2187 = vst [vmem:[%s218 + $0x18] sm:$0xff] %v2182
        %s2188 = sand.u32 %s97, 1
        %s2189 = scalar_lea.sflag [#allocation4], %s2188
        %s2190 = sand.u32 %s97, 1
        %s2191 = smul.addr %s2190, 32
        %s2192 = scalar_lea.vmem [#allocation8], %s2191
        // Predicated region
        $region45: #{tpu_custom_call.1} parent=31 // pred_check
          %p2193 = pneg %p107
        $region46: #{tpu_custom_call.1} parent=31 // pred_check_branch
          %2195 = sbr.rel (%p2193) target = $region48
        $region47: #{tpu_custom_call.1} parent=31 // pred_region
          %s2196 = smul.u32 2, %s21
          %s2198 = ssub.s32 512, 512
          %2199 = vsyncadd %s2189, %s2198
          %s2200 = smul.addr %s2196, 2
          %s2201 = smul.addr %s2200, 128
          %s2202 = scalar_lea.hbm %s3, %s2201
          %s2203 = sshll.u32 %s2192, 4
          %s2204 = int_to_ptr.vmem [resolvable:$true] %s2203
          %2209 = dma.vmem_to_hbm [thread:$0]  %s2204, 512, %s2202, %s2189, 256, 256, 16
        $region48: #{tpu_custom_call.1} parent=31 // pred_fallthru
          _
      $region32: #{tpu_custom_call.1} parent=5 // pred_fallthru
        _
      %p2210 = scmp.le.s32.totalorder 2, %s16
      // Predicated region
      $region49: #{tpu_custom_call.1} parent=5 // pred_check
        %p2211 = pneg %p2210
      $region50: #{tpu_custom_call.1} parent=5 // pred_check_branch
        %2213 = sbr.rel (%p2211) target = $region52
      $region51: #{tpu_custom_call.1} parent=5 // pred_region
        %s2214 = ssub.s32 %s16, 2
        // Predicated region
        $region53: #{tpu_custom_call.1} parent=51 // pred_check
          %p2215 = pneg %p113
        $region54: #{tpu_custom_call.1} parent=51 // pred_check_branch
          %2217 = sbr.rel (%p2215) target = $region56
        $region55: #{tpu_custom_call.1} parent=51 // pred_region
          %s2218 = sand.u32 %s98, 1
          %s2219 = scalar_lea.sflag [#allocation4], %s2218
          %s2220 = sand.u32 %s98, 1
          %s2221 = smul.addr %s2220, 32
          %s2222 = scalar_lea.vmem [#allocation8], %s2221
          %2223 = dma.done %s2219, 512
        $region56: #{tpu_custom_call.1} parent=51 // pred_fallthru
          _
      $region52: #{tpu_custom_call.1} parent=5 // pred_fallthru
        _
    $region6: #{tpu_custom_call.1} parent=1 // loop_footer
      %s20 = sadd.s32 1, %s16
    $region7: #{tpu_custom_call.1} parent=1 // loop_footer_branch
      %15 = sbr.rel target = $region3
    $region8: #{tpu_custom_call.1} parent=1 // loop_exit
      _
    %2224 = vsyncpa [#allocation3], 1
    %s2225 = scalar_lea.sflag [#allocation3], 1
    %2226 = vsyncpa %s2225, 1
    %2227 = vsyncpa [#allocation6], 1
    %2228 = vsyncpa [#allocation4], 1
    %s2229 = scalar_lea.sflag [#allocation4], 1
    %2230 = vsyncpa %s2229, 1

</llo_original>
